<compile_context>
chip_gen: v5e
topology: v5e:2x2
jax: 0.10.0
libtpu: 0.0.40
codegen_flags: <defaults>
</compile_context>

<pallas_src>
import functools

import jax
import jax.numpy as jnp
from jax.experimental import pallas as pl
from jax.experimental.pallas import tpu as pltpu

_INV_SQRT2 = 0.7071067811865476
_SQRT_2_OVER_PI = 0.7978845608028654


def _gelu_tanh(z):
    # tanh-approximate GELU: runs on the EUP instead of an erf VALU polynomial.
    return 0.5 * z * (1.0 + jnp.tanh(_SQRT_2_OVER_PI * (z + 0.044715 * z * z * z)))


def _round_up(x, m):
    return (x + m - 1) // m * m


# ------------------------------ Pallas kernels ------------------------------ #

def _fused_kernel(x_ref, w_ref, b_ref, g_ref, bt_ref, avg_ref, o_ref, y_ref, *,
                  eps, count_per_chan):
    """Single pass per batch: conv -> GroupNorm stats -> affine -> GELU."""
    # One K=16 MXU dot: (M, 4*C_in) @ (4*C_in, 4*C_out) -> parity-packed conv.
    y_ref[...] = jnp.dot(x_ref[0], w_ref[...], preferred_element_type=jnp.float32)
    y = y_ref[...]

    # Raw per-packed-channel moments; conv bias and zero pad-rows folded
    # analytically (pad rows produce exact zeros, so they contribute nothing).
    s0 = jnp.sum(y, axis=0, keepdims=True)                    # (1, 4*C_out)
    q0 = jnp.sum(y * y, axis=0, keepdims=True)                # (1, 4*C_out)
    b = b_ref[...]
    s1 = s0 + count_per_chan * b
    q1 = q0 + 2.0 * b * s0 + count_per_chan * (b * b)

    # Per-group averaging via a constant pooling matrix (entries 1/group_count)
    # — two tiny (1,256)x(256,256) dots, no lane-splitting reshapes.
    mean = jnp.dot(s1, avg_ref[...], preferred_element_type=jnp.float32)
    ex2 = jnp.dot(q1, avg_ref[...], preferred_element_type=jnp.float32)
    var = jnp.maximum(ex2 - mean * mean, 0.0)
    rstd = jax.lax.rsqrt(var + eps)

    scale = g_ref[...] * rstd                                 # gamma / std
    shift = bt_ref[...] + (b - mean) * scale                  # bias folded in
    z = y_ref[...] * scale + shift
    o_ref[0] = _gelu_tanh(z).astype(o_ref.dtype)


def _stats_kernel(x_ref, w_ref, s_ref, q_ref):
    """Two-pass fallback, pass 1: conv + per-(batch, packed-channel) moments."""
    @pl.when(pl.program_id(1) == 0)
    def _init():
        s_ref[...] = jnp.zeros_like(s_ref)
        q_ref[...] = jnp.zeros_like(q_ref)

    y = jnp.dot(x_ref[0], w_ref[...], preferred_element_type=jnp.float32)
    s_ref[0] += jnp.sum(y, axis=0, keepdims=True)
    q_ref[0] += jnp.sum(y * y, axis=0, keepdims=True)


def _apply_kernel(x_ref, w_ref, sc_ref, sh_ref, o_ref):
    """Two-pass fallback, pass 2: cheap conv recompute + folded affine + GELU."""
    y = jnp.dot(x_ref[0], w_ref[...], preferred_element_type=jnp.float32)
    z = y * sc_ref[0] + sh_ref[0]
    o_ref[0] = _gelu_tanh(z).astype(o_ref.dtype)


# ------------------------------ pallas_call wrappers ------------------------ #

def _fused_call(slab, w16, bias_p, gamma_p, beta_p, avg, m_real, eps,
                store_dtype, vmem_limit):
    n, m_pad, c16 = slab.shape
    c4 = w16.shape[1]
    kernel = functools.partial(_fused_kernel, eps=float(eps),
                               count_per_chan=float(m_real))
    vec = pl.BlockSpec((1, c4), lambda nn: (0, 0))
    return pl.pallas_call(
        kernel,
        out_shape=jax.ShapeDtypeStruct((n, m_pad, c4), store_dtype),
        grid=(n,),
        in_specs=[pl.BlockSpec((1, m_pad, c16), lambda nn: (nn, 0, 0)),
                  pl.BlockSpec((c16, c4), lambda nn: (0, 0)),
                  vec, vec, vec,
                  pl.BlockSpec((c4, c4), lambda nn: (0, 0))],
        out_specs=pl.BlockSpec((1, m_pad, c4), lambda nn: (nn, 0, 0)),
        scratch_shapes=[pltpu.VMEM((m_pad, c4), jnp.float32)],
        compiler_params=pltpu.CompilerParams(
            dimension_semantics=("parallel",),
            vmem_limit_bytes=int(vmem_limit)),
    )(slab, w16, bias_p, gamma_p, beta_p, avg)


def _stats_call(slab, w16, tile_m):
    n, m_pad, c16 = slab.shape
    c4 = w16.shape[1]
    t = m_pad // tile_m
    stat_spec = pl.BlockSpec((1, 1, c4), lambda nn, tt: (nn, 0, 0))
    return pl.pallas_call(
        _stats_kernel,
        out_shape=(jax.ShapeDtypeStruct((n, 1, c4), jnp.float32),
                   jax.ShapeDtypeStruct((n, 1, c4), jnp.float32)),
        grid=(n, t),
        in_specs=[pl.BlockSpec((1, tile_m, c16), lambda nn, tt: (nn, tt, 0)),
                  pl.BlockSpec((c16, c4), lambda nn, tt: (0, 0))],
        out_specs=(stat_spec, stat_spec),
        compiler_params=pltpu.CompilerParams(
            dimension_semantics=("parallel", "arbitrary")),
    )(slab, w16)


def _apply_call(slab, w16, scale, shift, tile_m, store_dtype):
    n, m_pad, c16 = slab.shape
    c4 = w16.shape[1]
    t = m_pad // tile_m
    vec_spec = pl.BlockSpec((1, 1, c4), lambda nn, tt: (nn, 0, 0))
    return pl.pallas_call(
        _apply_kernel,
        out_shape=jax.ShapeDtypeStruct((n, m_pad, c4), store_dtype),
        grid=(n, t),
        in_specs=[pl.BlockSpec((1, tile_m, c16), lambda nn, tt: (nn, tt, 0)),
                  pl.BlockSpec((c16, c4), lambda nn, tt: (0, 0)),
                  vec_spec, vec_spec],
        out_specs=pl.BlockSpec((1, tile_m, c4), lambda nn, tt: (nn, tt, 0)),
        compiler_params=pltpu.CompilerParams(
            dimension_semantics=("parallel", "parallel")),
    )(slab, w16, scale, shift)


# ------------------------------ forward (glue) ------------------------------ #

def _pack_weights16(w):
    """ConvTranspose2d weight (C_in, C_out, 3, 3) -> (4*C_in, 4*C_out).

    Row blocks (contracted axis) follow the wrapper tap-slab order
    [x(i,j), x(i,j+1), x(i+1,j), x(i+1,j+1)] (each C_in wide); column blocks are
    the output parities [(0,0), (0,1), (1,0), (1,1)], each C_out wide.
    """
    c_in, c_out = w.shape[0], w.shape[1]
    z = jnp.zeros((c_in, c_out), w.dtype)
    k = lambda kh, kw: w[:, :, kh, kw]
    taps = [
        jnp.concatenate([k(1, 1), k(1, 2), k(2, 1), k(2, 2)], axis=1),
        jnp.concatenate([z,       k(1, 0), z,       k(2, 0)], axis=1),
        jnp.concatenate([z,       z,       k(0, 1), k(0, 2)], axis=1),
        jnp.concatenate([z,       z,       z,       k(0, 0)], axis=1),
    ]
    return jnp.concatenate(taps, axis=0)


def _build_tap_slab(x, m_pad):
    """NCHW input -> (N, m_pad, 4*C_in) per-pixel tap slab (zero-padded rows)."""
    n, c_in, h, w = x.shape
    xcl = jnp.transpose(x, (0, 2, 3, 1)).astype(jnp.float32)          # NHWC
    xp = jnp.pad(xcl, ((0, 0), (0, 1), (0, 1), (0, 0)))               # +zero row/col
    slab = jnp.concatenate(
        [xp[:, :h, :w, :], xp[:, :h, 1:, :],
         xp[:, 1:, :w, :], xp[:, 1:, 1:, :]], axis=-1)                # (N,H,W,4*Cin)
    slab = slab.reshape(n, h * w, 4 * c_in)
    if m_pad > h * w:
        slab = jnp.pad(slab, ((0, 0), (0, m_pad - h * w), (0, 0)))
    return slab


def up_std_conv_forward(x, w, b, gamma, beta, *, stride=2, padding=1,
                        output_padding=1, num_groups=None, eps=1e-5,
                        use_bf16_matmul=False, store_dtype=jnp.bfloat16,
                        fused_vmem_budget=20 << 20, tile_pixels=None,
                        force_two_pass=False):
    """x: (N, C_in, H, W) NCHW.  w: (C_in, C_out, 3, 3) ConvTranspose2d layout."""
    n, c_in, h, w_cols = x.shape
    wc_in, c_out, kh, kw = w.shape
    if not (kh == 3 and kw == 3 and stride == 2 and padding == 1
            and output_padding == 1 and wc_in == c_in):
        # TODO(synk): general (kernel, stride, padding) transposed conv not
        # implemented; this fast path covers the module's upsampling config.
        raise NotImplementedError(
            "fast path requires kernel=3, stride=2, padding=1, output_padding=1")
    groups = num_groups if num_groups is not None else (32 if c_out % 32 == 0 else 16)
    if c_out % groups:
        raise ValueError("C_out must be divisible by the number of groups")
    cg = c_out // groups
    c4 = 4 * c_out
    c16 = 4 * c_in
    m = h * w_cols

    # Wrapper-side packing (tiny traffic vs the 4*C_out/pixel output).
    w16 = _pack_weights16(w.astype(jnp.float32))                       # (16, 4*C_out)
    bias_p = jnp.tile(b.astype(jnp.float32), 4).reshape(1, c4)
    gamma_p = jnp.tile(gamma.astype(jnp.float32), 4).reshape(1, c4)
    beta_p = jnp.tile(beta.astype(jnp.float32), 4).reshape(1, c4)

    in_isz = 2 if use_bf16_matmul else 4
    out_isz = jnp.dtype(store_dtype).itemsize
    m_pad8 = _round_up(m, 8)

    # VMEM estimate for the fused path: f32 scratch + double-buffered in/out
    # blocks (+1 MiB of small constants / headroom).
    fused_need = (m_pad8 * c4 * 4 + 2 * m_pad8 * c4 * out_isz
                  + 2 * m_pad8 * 128 * in_isz + (1 << 20))
    use_fused = (not force_two_pass) and fused_need <= fused_vmem_budget

    if use_fused:
        m_pad = m_pad8
    else:
        if tile_pixels is None:
            # Byte-budgeted tile (~4 MiB output block); no whole-image fallback.
            tile_pixels = max(8, min(m_pad8, ((4 << 20) // (c4 * out_isz)) // 8 * 8))
        tile_pixels = max(8, _round_up(min(int(tile_pixels), m_pad8), 8))
        m_pad = _round_up(m, tile_pixels)

    slab = _build_tap_slab(x, m_pad)                                   # (N, m_pad, 16)
    if use_bf16_matmul:
        slab = slab.astype(jnp.bfloat16)
        w16 = w16.astype(jnp.bfloat16)

    if use_fused:
        # Constant per-group pooling matrix: packed channel pc belongs to group
        # (pc % C_out) // cg; entries 1/(group element count) so one dot maps
        # per-channel sums -> per-channel group means.
        gid = (jnp.arange(c4) % c_out) // cg
        avg = (gid[:, None] == gid[None, :]).astype(jnp.float32) / (4.0 * m * cg)
        vmem_limit = min(max(fused_need + (4 << 20), 20 << 20), 30 << 20)
        out_packed = _fused_call(slab, w16, bias_p, gamma_p, beta_p, avg,
                                 m, eps, store_dtype, vmem_limit)
    else:
        # TODO(synk): on v7x with N==1 this pins pass 1 to one TensorCore; a
        # per-core partial-stats split over row tiles would recover the 2nd core.
        s0, q0 = _stats_call(slab, w16, tile_pixels)
        s0 = s0[:, 0]                                                  # (N, 4*C_out)
        q0 = q0[:, 0]
        # Fold the conv bias analytically, reduce to groups, build the affine.
        s1 = s0 + float(m) * bias_p
        q1 = q0 + 2.0 * bias_p * s0 + float(m) * (bias_p * bias_p)
        count = 4.0 * m * cg
        sum_g = s1.reshape(n, 4, groups, cg).sum(axis=(1, 3))
        sq_g = q1.reshape(n, 4, groups, cg).sum(axis=(1, 3))
        mean_g = sum_g / count
        var_g = jnp.maximum(sq_g / count - mean_g * mean_g, 0.0)
        rstd_g = jax.lax.rsqrt(var_g + eps)
        mean_c = jnp.repeat(mean_g, cg, axis=1)                        # (N, C_out)
        rstd_c = jnp.repeat(rstd_g, cg, axis=1)
        scale = gamma_p * jnp.tile(rstd_c, (1, 4))                     # (N, 4*C_out)
        shift = beta_p + (bias_p - jnp.tile(mean_c, (1, 4))) * scale
        out_packed = _apply_call(slab, w16, scale.reshape(n, 1, c4),
                                 shift.reshape(n, 1, c4), tile_pixels, store_dtype)

    # Pixel-shuffle parity planes back to NCHW (module semantics), cast to f32.
    # TODO(synk): hand the consumer the parity-packed (N, H*W, 4*C_out) / NHWC
    # layout directly to avoid this full-activation HBM round trip.
    out = out_packed[:, :m].astype(jnp.float32).reshape(n, h, w_cols, 2, 2, c_out)
    out = out.transpose(0, 5, 1, 3, 2, 4).reshape(n, c_out, 2 * h, 2 * w_cols)
    return out


# --------------------------- pure-JAX reference ----------------------------- #

def _reference_upstdconv(x, w, b, gamma, beta, groups, eps=1e-5):
    k = w.shape[2]
    rhs = jnp.flip(w, axis=(2, 3)).transpose(1, 0, 2, 3)               # (C_out,C_in,K,K)
    pad = (k - 1 - 1, k - 1 - 1 + 1)                                   # (K-1-p, K-1-p+op)
    y = jax.lax.conv_general_dilated(
        x, rhs, window_strides=(1, 1), padding=[pad, pad],
        lhs_dilation=(2, 2), rhs_dilation=(1, 1),
        dimension_numbers=("NCHW", "OIHW", "NCHW"))
    y = y + b[None, :, None, None]
    n, c, oh, ow = y.shape
    yg = y.reshape(n, groups, c // groups, oh, ow)
    mean = yg.mean(axis=(2, 3, 4), keepdims=True)
    var = ((yg - mean) ** 2).mean(axis=(2, 3, 4), keepdims=True)
    yn = ((yg - mean) * jax.lax.rsqrt(var + eps)).reshape(n, c, oh, ow)
    yn = yn * gamma[None, :, None, None] + beta[None, :, None, None]
    return 0.5 * yn * (1.0 + jax.lax.erf(yn * _INV_SQRT2))             # exact GELU


# ----------------------------------- main ------------------------------------ #

if __name__ == "__main__":
    # upStdConv(C_in=4, C_out=64, kernel_size=3, stride=2, padding=1)
    N, C_in, H, W = 2, 4, 16, 16
    C_out, K, stride, padding = 64, 3, 2, 1

    key = jax.random.PRNGKey(0)
    kx, kw, kb, kg, kbe = jax.random.split(key, 5)
    x = jax.random.normal(kx, (N, C_in, H, W), dtype=jnp.float32)
    w = 0.1 * jax.random.normal(kw, (C_in, C_out, K, K), dtype=jnp.float32)
    b = 0.1 * jax.random.normal(kb, (C_out,), dtype=jnp.float32)
    gamma = 1.0 + 0.05 * jax.random.normal(kg, (C_out,), dtype=jnp.float32)
    beta = 0.05 * jax.random.normal(kbe, (C_out,), dtype=jnp.float32)

    groups = 32 if C_out % 32 == 0 else 16
    ref = _reference_upstdconv(x, w, b, gamma, beta, groups)

    # Default single-pass fused path.
    out = up_std_conv_forward(x, w, b, gamma, beta, stride=stride,
                              padding=padding, output_padding=1)
    out = jax.block_until_ready(out)
    assert out.shape == (N, C_out, 2 * H, 2 * W), out.shape
    assert bool(jnp.all(jnp.isfinite(out)))
    err = float(jnp.max(jnp.abs(out - ref)))
    assert err < 5e-2, f"fused path: max abs error vs reference {err}"

    # Forced two-pass fallback with a small tile (exercises accumulation, T>1).
    out2 = up_std_conv_forward(x, w, b, gamma, beta, stride=stride,
                               padding=padding, output_padding=1,
                               force_two_pass=True, tile_pixels=64)
    out2 = jax.block_until_ready(out2)
    assert out2.shape == (N, C_out, 2 * H, 2 * W), out2.shape
    err2 = float(jnp.max(jnp.abs(out2 - ref)))
    assert err2 < 5e-2, f"two-pass path: max abs error vs reference {err2}"

    print("KERNEL_OK")
</pallas_src>

<mosaic_0001>
module attributes {stable_mosaic.version = 11 : i64} {
  func.func @_fused_kernel(%arg0: i32, %arg1: memref<1x256x16xf32, #tpu.memory_space<vmem>>, %arg2: memref<16x256xf32, #tpu.memory_space<vmem>>, %arg3: memref<1x256xf32, #tpu.memory_space<vmem>>, %arg4: memref<1x256xf32, #tpu.memory_space<vmem>>, %arg5: memref<1x256xf32, #tpu.memory_space<vmem>>, %arg6: memref<256x256xf32, #tpu.memory_space<vmem>>, %arg7: memref<1x256x256xbf16, #tpu.memory_space<vmem>>, %arg8: memref<256x256xf32, #tpu.memory_space<vmem>>) attributes {dimension_semantics = [#tpu.dimension_semantics<parallel>], iteration_bounds = array<i64: 2>, scalar_prefetch = 0 : i64, scratch_operands = 1 : i64, tpu.core_type = #tpu.core_type<tc>, window_params = [{transform_indices = @transform_0, window_bounds = array<i64: 1, 256, 16>}, {pipeline_mode = #tpu.pipeline_mode<synchronous>, transform_indices = @transform_1, window_bounds = array<i64: 16, 256>}, {pipeline_mode = #tpu.pipeline_mode<synchronous>, transform_indices = @transform_2, window_bounds = array<i64: 1, 256>}, {pipeline_mode = #tpu.pipeline_mode<synchronous>, transform_indices = @transform_3, window_bounds = array<i64: 1, 256>}, {pipeline_mode = #tpu.pipeline_mode<synchronous>, transform_indices = @transform_4, window_bounds = array<i64: 1, 256>}, {pipeline_mode = #tpu.pipeline_mode<synchronous>, transform_indices = @transform_5, window_bounds = array<i64: 256, 256>}, {transform_indices = @transform_6, window_bounds = array<i64: 1, 256, 256>}]} {
    %c0 = arith.constant 0 : index
    %c0_0 = arith.constant 0 : index
    %c0_1 = arith.constant 0 : index
    %0 = vector.load %arg1[%c0, %c0_0, %c0_1] : memref<1x256x16xf32, #tpu.memory_space<vmem>>, vector<1x256x16xf32>
    %1 = vector.shape_cast %0 : vector<1x256x16xf32> to vector<256x16xf32>
    %c0_2 = arith.constant 0 : index
    %c0_3 = arith.constant 0 : index
    %2 = vector.load %arg2[%c0_2, %c0_3] : memref<16x256xf32, #tpu.memory_space<vmem>>, vector<16x256xf32>
    %cst = arith.constant dense<0.000000e+00> : vector<256x256xf32>
    %3 = tpu.matmul %1, %2, %cst {dimension_numbers = #tpu.dot_dimension_numbers<[1], [0], [0], [1], [0, 0, 1, 1], [], []>} : vector<256x16xf32>, vector<16x256xf32>, vector<256x256xf32> -> vector<256x256xf32>
    %c0_4 = arith.constant 0 : index
    %c0_5 = arith.constant 0 : index
    %4 = vector.load %arg8[%c0_4, %c0_5] : memref<256x256xf32, #tpu.memory_space<vmem>>, vector<256x256xf32>
    tpu.vector_store %arg8[%c0_4, %c0_5], %3 {strides = array<i32>} : memref<256x256xf32, #tpu.memory_space<vmem>>, vector<256x256xf32>,
    %c0_6 = arith.constant 0 : index
    %c0_7 = arith.constant 0 : index
    %5 = vector.load %arg8[%c0_6, %c0_7] : memref<256x256xf32, #tpu.memory_space<vmem>>, vector<256x256xf32>
    %cst_8 = arith.constant dense<0.000000e+00> : vector<256xf32>
    %6 = vector.multi_reduction <add>, %5, %cst_8 [0] : vector<256x256xf32> to vector<256xf32>
    %7 = vector.shape_cast %6 : vector<256xf32> to vector<1x256xf32>
    %8 = arith.mulf %5, %5 : vector<256x256xf32>
    %cst_9 = arith.constant dense<0.000000e+00> : vector<256xf32>
    %9 = vector.multi_reduction <add>, %8, %cst_9 [0] : vector<256x256xf32> to vector<256xf32>
    %10 = vector.shape_cast %9 : vector<256xf32> to vector<1x256xf32>
    %c0_10 = arith.constant 0 : index
    %c0_11 = arith.constant 0 : index
    %11 = vector.load %arg3[%c0_10, %c0_11] : memref<1x256xf32, #tpu.memory_space<vmem>>, vector<1x256xf32>
    %cst_12 = arith.constant 2.560000e+02 : f32
    %12 = vector.broadcast %cst_12 : f32 to vector<1x256xf32>
    %13 = arith.mulf %12, %11 : vector<1x256xf32>
    %14 = arith.addf %7, %13 : vector<1x256xf32>
    %cst_13 = arith.constant 2.000000e+00 : f32
    %15 = vector.broadcast %cst_13 : f32 to vector<1x256xf32>
    %16 = arith.mulf %15, %11 : vector<1x256xf32>
    %17 = arith.mulf %16, %7 : vector<1x256xf32>
    %18 = arith.addf %10, %17 : vector<1x256xf32>
    %19 = arith.mulf %11, %11 : vector<1x256xf32>
    %cst_14 = arith.constant 2.560000e+02 : f32
    %20 = vector.broadcast %cst_14 : f32 to vector<1x256xf32>
    %21 = arith.mulf %20, %19 : vector<1x256xf32>
    %22 = arith.addf %18, %21 : vector<1x256xf32>
    %c0_15 = arith.constant 0 : index
    %c0_16 = arith.constant 0 : index
    %23 = vector.load %arg6[%c0_15, %c0_16] : memref<256x256xf32, #tpu.memory_space<vmem>>, vector<256x256xf32>
    %cst_17 = arith.constant dense<0.000000e+00> : vector<1x256xf32>
    %24 = tpu.matmul %14, %23, %cst_17 {dimension_numbers = #tpu.dot_dimension_numbers<[1], [0], [0], [1], [0, 0, 1, 1], [], []>} : vector<1x256xf32>, vector<256x256xf32>, vector<1x256xf32> -> vector<1x256xf32>
    %c0_18 = arith.constant 0 : index
    %c0_19 = arith.constant 0 : index
    %25 = vector.load %arg6[%c0_18, %c0_19] : memref<256x256xf32, #tpu.memory_space<vmem>>, vector<256x256xf32>
    %cst_20 = arith.constant dense<0.000000e+00> : vector<1x256xf32>
    %26 = tpu.matmul %22, %25, %cst_20 {dimension_numbers = #tpu.dot_dimension_numbers<[1], [0], [0], [1], [0, 0, 1, 1], [], []>} : vector<1x256xf32>, vector<256x256xf32>, vector<1x256xf32> -> vector<1x256xf32>
    %27 = arith.mulf %24, %24 : vector<1x256xf32>
    %28 = arith.subf %26, %27 : vector<1x256xf32>
    %cst_21 = arith.constant 0.000000e+00 : f32
    %29 = vector.broadcast %cst_21 : f32 to vector<1x256xf32>
    %30 = arith.maximumf %28, %29 : vector<1x256xf32>
    %cst_22 = arith.constant 9.99999974E-6 : f32
    %31 = vector.broadcast %cst_22 : f32 to vector<1x256xf32>
    %32 = arith.addf %30, %31 : vector<1x256xf32>
    %33 = math.rsqrt %32 : vector<1x256xf32>
    %c0_23 = arith.constant 0 : index
    %c0_24 = arith.constant 0 : index
    %34 = vector.load %arg4[%c0_23, %c0_24] : memref<1x256xf32, #tpu.memory_space<vmem>>, vector<1x256xf32>
    %35 = arith.mulf %34, %33 : vector<1x256xf32>
    %c0_25 = arith.constant 0 : index
    %c0_26 = arith.constant 0 : index
    %36 = vector.load %arg5[%c0_25, %c0_26] : memref<1x256xf32, #tpu.memory_space<vmem>>, vector<1x256xf32>
    %37 = arith.subf %11, %24 : vector<1x256xf32>
    %38 = arith.mulf %37, %35 : vector<1x256xf32>
    %39 = arith.addf %36, %38 : vector<1x256xf32>
    %c0_27 = arith.constant 0 : index
    %c0_28 = arith.constant 0 : index
    %40 = vector.load %arg8[%c0_27, %c0_28] : memref<256x256xf32, #tpu.memory_space<vmem>>, vector<256x256xf32>
    %41 = vector.broadcast %35 : vector<1x256xf32> to vector<256x256xf32>
    %42 = arith.mulf %40, %41 : vector<256x256xf32>
    %43 = vector.broadcast %39 : vector<1x256xf32> to vector<256x256xf32>
    %44 = arith.addf %42, %43 : vector<256x256xf32>
    %cst_29 = arith.constant 5.000000e-01 : f32
    %45 = vector.broadcast %cst_29 : f32 to vector<256x256xf32>
    %46 = arith.mulf %45, %44 : vector<256x256xf32>
    %cst_30 = arith.constant 4.471500e-02 : f32
    %47 = vector.broadcast %cst_30 : f32 to vector<256x256xf32>
    %48 = arith.mulf %47, %44 : vector<256x256xf32>
    %49 = arith.mulf %48, %44 : vector<256x256xf32>
    %50 = arith.mulf %49, %44 : vector<256x256xf32>
    %51 = arith.addf %44, %50 : vector<256x256xf32>
    %cst_31 = arith.constant 0.797884583 : f32
    %52 = vector.broadcast %cst_31 : f32 to vector<256x256xf32>
    %53 = arith.mulf %52, %51 : vector<256x256xf32>
    %54 = math.tanh %53 : vector<256x256xf32>
    %cst_32 = arith.constant 1.000000e+00 : f32
    %55 = vector.broadcast %cst_32 : f32 to vector<256x256xf32>
    %56 = arith.addf %55, %54 : vector<256x256xf32>
    %57 = arith.mulf %46, %56 : vector<256x256xf32>
    %58 = arith.truncf %57 : vector<256x256xf32> to vector<256x256xbf16>
    %c0_33 = arith.constant 0 : index
    %c0_34 = arith.constant 0 : index
    %c0_35 = arith.constant 0 : index
    %59 = vector.load %arg7[%c0_33, %c0_34, %c0_35] : memref<1x256x256xbf16, #tpu.memory_space<vmem>>, vector<1x256x256xbf16>
    %60 = vector.shape_cast %59 : vector<1x256x256xbf16> to vector<256x256xbf16>
    %61 = vector.shape_cast %58 : vector<256x256xbf16> to vector<1x256x256xbf16>
    tpu.vector_store %arg7[%c0_33, %c0_34, %c0_35], %61 {strides = array<i32>} : memref<1x256x256xbf16, #tpu.memory_space<vmem>>, vector<1x256x256xbf16>,
    return
  }
  func.func @transform_0(%arg0: i32) -> (i32, i32, i32) {
    %c0_i32 = arith.constant 0 : i32
    %c0_i32_0 = arith.constant 0 : i32
    %c0_i32_1 = arith.constant 0 : i32
    return %arg0, %c0_i32, %c0_i32_0 : i32, i32, i32
  }
  func.func @transform_1(%arg0: i32) -> (i32, i32) {
    %c0_i32 = arith.constant 0 : i32
    %c0_i32_0 = arith.constant 0 : i32
    %c0_i32_1 = arith.constant 0 : i32
    return %c0_i32, %c0_i32_0 : i32, i32
  }
  func.func @transform_2(%arg0: i32) -> (i32, i32) {
    %c0_i32 = arith.constant 0 : i32
    %c0_i32_0 = arith.constant 0 : i32
    %c0_i32_1 = arith.constant 0 : i32
    return %c0_i32, %c0_i32_0 : i32, i32
  }
  func.func @transform_3(%arg0: i32) -> (i32, i32) {
    %c0_i32 = arith.constant 0 : i32
    %c0_i32_0 = arith.constant 0 : i32
    %c0_i32_1 = arith.constant 0 : i32
    return %c0_i32, %c0_i32_0 : i32, i32
  }
  func.func @transform_4(%arg0: i32) -> (i32, i32) {
    %c0_i32 = arith.constant 0 : i32
    %c0_i32_0 = arith.constant 0 : i32
    %c0_i32_1 = arith.constant 0 : i32
    return %c0_i32, %c0_i32_0 : i32, i32
  }
  func.func @transform_5(%arg0: i32) -> (i32, i32) {
    %c0_i32 = arith.constant 0 : i32
    %c0_i32_0 = arith.constant 0 : i32
    %c0_i32_1 = arith.constant 0 : i32
    return %c0_i32, %c0_i32_0 : i32, i32
  }
  func.func @transform_6(%arg0: i32) -> (i32, i32, i32) {
    %c0_i32 = arith.constant 0 : i32
    %c0_i32_0 = arith.constant 0 : i32
    %c0_i32_1 = arith.constant 0 : i32
    return %arg0, %c0_i32, %c0_i32_0 : i32, i32, i32
  }
}

</mosaic_0001>

<llo_original>
// kernel: tpu_custom_call.1
$region0: #{tpu_custom_call.1}
  #allocation0 [shape = 'u32[]', space=smem, size = 0x4, offset = 0x4, fixed_abs, tag = 'smem constant byte address 0x4 - core index']
  #allocation1 [shape = 'u32[72,128]{1,0:T(1,128)}', space=vmem, size = 0x9000, scoped, tag = 'internal scratch']
  #allocation2 [shape = 'f32[256,256]{1,0:T(8,128)}', space=vmem, size = 0x40000, scoped, tag = 'scratch operand']
  %s0 = inlined_call_operand.vmem [shape: f32[2,256,16], index: 0, kind: input, shape index: {}]
  %s1 = inlined_call_operand.vmem [shape: f32[16,256], index: 1, kind: input, shape index: {}]
  %s2 = inlined_call_operand.vmem [shape: f32[1,256], index: 2, kind: input, shape index: {}]
  %s3 = inlined_call_operand.vmem [shape: f32[1,256], index: 3, kind: input, shape index: {}]
  %s4 = inlined_call_operand.vmem [shape: f32[1,256], index: 4, kind: input, shape index: {}]
  %s5 = inlined_call_operand.vmem [shape: f32[256,256], index: 5, kind: input, shape index: {}]
  %s6 = inlined_call_operand.hbm [shape: bf16[2,256,256], index: 6, kind: output, shape index: {}]
  %s7 = sld [smem:[#allocation0]]
  $region57: #{tpu_custom_call.1} parent=0
    _
  %s9 = ssub.s32 1, %s7
  %s10 = scalar_select 0, %s9, %s7
  $region1: #{tpu_custom_call.1} parent=0
    #allocation3 [shape = 'u8[262144]{0}', space=vmem, size = 0x40000, scoped, tag = 'output window, operand 0']
    #allocation4 [shape = 's32[2]{0}', space=sflag, size = 0x8, scoped, tag = 'scoped memory for tpu_custom_call.1']
    %11 = vsyncpa [#allocation4], 0
    %s12 = scalar_lea.sflag [#allocation4], 1
    %13 = vsyncpa %s12, 0
    loop: start=0, step=1, limit=4
    $region2: #{tpu_custom_call.1} parent=1 // loop_pre_header
      _
    $region3: #{tpu_custom_call.1} parent=1 // loop_header
      %s15 = sphi 0, %s19
      %p16 = scmp.ge.s32.totalorder %s15, 4
      %s25 = sphi 0, %s27
      %s28 = sphi 0, %s25
      %s29 = sphi 0, %s28
      %s45 = sphi 0, %s29
      %s49 = sphi 0, %s49
      %s51 = sphi 0, %s49
      %s52 = sphi 0, %s51
      %s66 = sphi 0, %s52
      %s70 = sphi 0, %s70
      %s72 = sphi 0, %s70
      %s73 = sphi 0, %s72
      %s87 = sphi 0, %s73
      %s91 = sphi 0, %s91
      %s93 = sphi 0, %s91
      %s94 = sphi 0, %s93
      %s108 = sphi 0, %s94
      %s112 = sphi 0, %s112
      %s114 = sphi 0, %s112
      %s115 = sphi 0, %s114
      %s129 = sphi 0, %s115
      %s133 = sphi 0, %s133
      %s135 = sphi 0, %s133
      %s136 = sphi 0, %s135
      %s150 = sphi 0, %s136
      %s156 = sphi 0, %s158
      %s159 = sphi 0, %s156
      %s160 = sphi 0, %s159
      %s176 = sphi 0, %s160
    $region4: #{tpu_custom_call.1} parent=1 // loop_header_branch
      %18 = sbr.rel (%p16) target = $region8
    $region5: #{tpu_custom_call.1} parent=1 // loop_body
      %s20 = ssub.s32 %s15, 1
      %s21 = ssub.s32 %s15, 2
      %s22 = sadd.s32 %s15, 1
      %s23 = ssub.s32 %s15, %s22
      %p24 = scmp.eq.s32.totalorder %s23, 0
      %s26 = sadd.s32 %s25, 1
      %s27 = scalar_select %p24, %s25, %s26
      %p30 = pneg %p24
      %p31 = scmp.eq.s32.totalorder %s15, 1
      %p32 = por %p30, %p31
      %p33 = scmp.ne.s32.totalorder %s25, %s28
      %p34 = scmp.eq.s32.totalorder %s15, 0
      %p35 = por %p33, %p34
      %p36 = scmp.ne.s32.totalorder %s25, %s28
      %p37 = scmp.eq.s32.totalorder %s20, 1
      %p38 = por %p36, %p37
      %p39 = scmp.ne.s32.totalorder %s28, %s29
      %p40 = scmp.eq.s32.totalorder %s20, 0
      %p41 = por %p39, %p40
      %p42 = scmp.ne.s32.totalorder %s28, %s29
      %p43 = scmp.eq.s32.totalorder %s21, 1
      %p44 = por %p42, %p43
      %p46 = scmp.ne.s32.totalorder %s29, %s45
      %p47 = scmp.eq.s32.totalorder %s21, 0
      %p48 = por %p46, %p47
      %s50 = sadd.s32 %s49, 1
      %p53 = scmp.eq.s32.totalorder %s15, 1
      %p54 = scmp.ne.s32.totalorder %s49, %s51
      %p55 = scmp.eq.s32.totalorder %s15, 0
      %p56 = por %p54, %p55
      %p57 = scmp.ne.s32.totalorder %s49, %s51
      %p58 = scmp.eq.s32.totalorder %s20, 1
      %p59 = por %p57, %p58
      %p60 = scmp.ne.s32.totalorder %s51, %s52
      %p61 = scmp.eq.s32.totalorder %s20, 0
      %p62 = por %p60, %p61
      %p63 = scmp.ne.s32.totalorder %s51, %s52
      %p64 = scmp.eq.s32.totalorder %s21, 1
      %p65 = por %p63, %p64
      %p67 = scmp.ne.s32.totalorder %s52, %s66
      %p68 = scmp.eq.s32.totalorder %s21, 0
      %p69 = por %p67, %p68
      %s71 = sadd.s32 %s70, 1
      %p74 = scmp.eq.s32.totalorder %s15, 1
      %p75 = scmp.ne.s32.totalorder %s70, %s72
      %p76 = scmp.eq.s32.totalorder %s15, 0
      %p77 = por %p75, %p76
      %p78 = scmp.ne.s32.totalorder %s70, %s72
      %p79 = scmp.eq.s32.totalorder %s20, 1
      %p80 = por %p78, %p79
      %p81 = scmp.ne.s32.totalorder %s72, %s73
      %p82 = scmp.eq.s32.totalorder %s20, 0
      %p83 = por %p81, %p82
      %p84 = scmp.ne.s32.totalorder %s72, %s73
      %p85 = scmp.eq.s32.totalorder %s21, 1
      %p86 = por %p84, %p85
      %p88 = scmp.ne.s32.totalorder %s73, %s87
      %p89 = scmp.eq.s32.totalorder %s21, 0
      %p90 = por %p88, %p89
      %s92 = sadd.s32 %s91, 1
      %p95 = scmp.eq.s32.totalorder %s15, 1
      %p96 = scmp.ne.s32.totalorder %s91, %s93
      %p97 = scmp.eq.s32.totalorder %s15, 0
      %p98 = por %p96, %p97
      %p99 = scmp.ne.s32.totalorder %s91, %s93
      %p100 = scmp.eq.s32.totalorder %s20, 1
      %p101 = por %p99, %p100
      %p102 = scmp.ne.s32.totalorder %s93, %s94
      %p103 = scmp.eq.s32.totalorder %s20, 0
      %p104 = por %p102, %p103
      %p105 = scmp.ne.s32.totalorder %s93, %s94
      %p106 = scmp.eq.s32.totalorder %s21, 1
      %p107 = por %p105, %p106
      %p109 = scmp.ne.s32.totalorder %s94, %s108
      %p110 = scmp.eq.s32.totalorder %s21, 0
      %p111 = por %p109, %p110
      %s113 = sadd.s32 %s112, 1
      %p116 = scmp.eq.s32.totalorder %s15, 1
      %p117 = scmp.ne.s32.totalorder %s112, %s114
      %p118 = scmp.eq.s32.totalorder %s15, 0
      %p119 = por %p117, %p118
      %p120 = scmp.ne.s32.totalorder %s112, %s114
      %p121 = scmp.eq.s32.totalorder %s20, 1
      %p122 = por %p120, %p121
      %p123 = scmp.ne.s32.totalorder %s114, %s115
      %p124 = scmp.eq.s32.totalorder %s20, 0
      %p125 = por %p123, %p124
      %p126 = scmp.ne.s32.totalorder %s114, %s115
      %p127 = scmp.eq.s32.totalorder %s21, 1
      %p128 = por %p126, %p127
      %p130 = scmp.ne.s32.totalorder %s115, %s129
      %p131 = scmp.eq.s32.totalorder %s21, 0
      %p132 = por %p130, %p131
      %s134 = sadd.s32 %s133, 1
      %p137 = scmp.eq.s32.totalorder %s15, 1
      %p138 = scmp.ne.s32.totalorder %s133, %s135
      %p139 = scmp.eq.s32.totalorder %s15, 0
      %p140 = por %p138, %p139
      %p141 = scmp.ne.s32.totalorder %s133, %s135
      %p142 = scmp.eq.s32.totalorder %s20, 1
      %p143 = por %p141, %p142
      %p144 = scmp.ne.s32.totalorder %s135, %s136
      %p145 = scmp.eq.s32.totalorder %s20, 0
      %p146 = por %p144, %p145
      %p147 = scmp.ne.s32.totalorder %s135, %s136
      %p148 = scmp.eq.s32.totalorder %s21, 1
      %p149 = por %p147, %p148
      %p151 = scmp.ne.s32.totalorder %s136, %s150
      %p152 = scmp.eq.s32.totalorder %s21, 0
      %p153 = por %p151, %p152
      %s154 = ssub.s32 %s15, %s22
      %p155 = scmp.eq.s32.totalorder %s154, 0
      %s157 = sadd.s32 %s156, 1
      %s158 = scalar_select %p155, %s156, %s157
      %p161 = pneg %p155
      %p162 = scmp.eq.s32.totalorder %s15, 1
      %p163 = por %p161, %p162
      %p164 = scmp.ne.s32.totalorder %s156, %s159
      %p165 = scmp.eq.s32.totalorder %s15, 0
      %p166 = por %p164, %p165
      %p167 = scmp.ne.s32.totalorder %s156, %s159
      %p168 = scmp.eq.s32.totalorder %s20, 1
      %p169 = por %p167, %p168
      %p170 = scmp.ne.s32.totalorder %s159, %s160
      %p171 = scmp.eq.s32.totalorder %s20, 0
      %p172 = por %p170, %p171
      %p173 = scmp.ne.s32.totalorder %s159, %s160
      %p174 = scmp.eq.s32.totalorder %s21, 1
      %p175 = por %p173, %p174
      %p177 = scmp.ne.s32.totalorder %s160, %s176
      %p178 = scmp.eq.s32.totalorder %s21, 0
      %p179 = por %p177, %p178
      %p180 = scmp.le.s32.totalorder 1, %s15
      %p181 = scmp.lt.s32.totalorder %s15, 3
      %p182 = pnand %p180, %p181
      %p183 = pneg %p182
      // Predicated region
      $region9: #{tpu_custom_call.1} parent=5 // pred_check
        _
      $region10: #{tpu_custom_call.1} parent=5 // pred_check_branch
        %185 = sbr.rel (%p182) target = $region12
      $region11: #{tpu_custom_call.1} parent=5 // pred_region
        %s186 = ssub.s32 %s15, 1
        // Predicated region
        $region13: #{tpu_custom_call.1} parent=11 // pred_check
          %p187 = pneg %p62
        $region14: #{tpu_custom_call.1} parent=11 // pred_check_branch
          %189 = sbr.rel (%p187) target = $region16
        $region15: #{tpu_custom_call.1} parent=11 // pred_region
          _
        $region16: #{tpu_custom_call.1} parent=11 // pred_fallthru
          _
        // Predicated region
        $region17: #{tpu_custom_call.1} parent=11 // pred_check
          %p190 = pneg %p83
        $region18: #{tpu_custom_call.1} parent=11 // pred_check_branch
          %192 = sbr.rel (%p190) target = $region20
        $region19: #{tpu_custom_call.1} parent=11 // pred_region
          _
        $region20: #{tpu_custom_call.1} parent=11 // pred_fallthru
          _
        // Predicated region
        $region21: #{tpu_custom_call.1} parent=11 // pred_check
          %p193 = pneg %p104
        $region22: #{tpu_custom_call.1} parent=11 // pred_check_branch
          %195 = sbr.rel (%p193) target = $region24
        $region23: #{tpu_custom_call.1} parent=11 // pred_region
          _
        $region24: #{tpu_custom_call.1} parent=11 // pred_fallthru
          _
        // Predicated region
        $region25: #{tpu_custom_call.1} parent=11 // pred_check
          %p196 = pneg %p125
        $region26: #{tpu_custom_call.1} parent=11 // pred_check_branch
          %198 = sbr.rel (%p196) target = $region28
        $region27: #{tpu_custom_call.1} parent=11 // pred_region
          _
        $region28: #{tpu_custom_call.1} parent=11 // pred_fallthru
          _
        // Predicated region
        $region29: #{tpu_custom_call.1} parent=11 // pred_check
          %p199 = pneg %p146
        $region30: #{tpu_custom_call.1} parent=11 // pred_check_branch
          %201 = sbr.rel (%p199) target = $region32
        $region31: #{tpu_custom_call.1} parent=11 // pred_region
          _
        $region32: #{tpu_custom_call.1} parent=11 // pred_fallthru
          _
      $region12: #{tpu_custom_call.1} parent=5 // pred_fallthru
        _
      %p202 = scmp.lt.s32.totalorder %s15, 2
      // Predicated region
      $region33: #{tpu_custom_call.1} parent=5 // pred_check
        %p203 = pneg %p202
      $region34: #{tpu_custom_call.1} parent=5 // pred_check_branch
        %205 = sbr.rel (%p203) target = $region36
      $region35: #{tpu_custom_call.1} parent=5 // pred_region
        // Predicated region
        $region37: #{tpu_custom_call.1} parent=35 // pred_check
          %p206 = pneg %p35
        $region38: #{tpu_custom_call.1} parent=35 // pred_check_branch
          %208 = sbr.rel (%p206) target = $region40
        $region39: #{tpu_custom_call.1} parent=35 // pred_region
          %p209 = scmp.lt.s32.totalorder %s15, 1
          %s210 = scalar_select %p209, %s15, 1
          %s211 = smul.addr %s210, 32
          %s212 = smul.addr %s211, 8
          %s213 = scalar_lea.vmem %s0, %s212
        $region40: #{tpu_custom_call.1} parent=35 // pred_fallthru
          _
      $region36: #{tpu_custom_call.1} parent=5 // pred_fallthru
        _
      %p214 = scmp.le.s32.totalorder 1, %s15
      %p215 = scmp.lt.s32.totalorder %s15, 3
      %p216 = pnand %p214, %p215
      %p217 = pneg %p216
      // Predicated region
      $region41: #{tpu_custom_call.1} parent=5 // pred_check
        _
      $region42: #{tpu_custom_call.1} parent=5 // pred_check_branch
        %219 = sbr.rel (%p216) target = $region44
      $region43: #{tpu_custom_call.1} parent=5 // pred_region
        %s220 = ssub.s32 %s15, 1
        %p221 = scmp.lt.s32.totalorder %s20, 1
        %s222 = scalar_select %p221, %s20, 1
        %s223 = smul.addr %s222, 32
        %s224 = smul.addr %s223, 8
        %s225 = scalar_lea.vmem %s0, %s224
        %p226 = pneg %p41
        %p227 = pneg %p38
        %p228 = pneg %p62
        %p229 = pneg %p59
        %p230 = pneg %p83
        %p231 = pneg %p80
        %p232 = pneg %p104
        %p233 = pneg %p101
        %p234 = pneg %p125
        %p235 = pneg %p122
        %p236 = pneg %p146
        %p237 = pneg %p143
        %p238 = pneg %p172
        %p239 = pneg %p169
        %s240 = sand.u32 %s159, 1
        %s241 = scalar_lea.sflag [#allocation4], %s240
        %s242 = sand.u32 %s159, 1
        %s243 = smul.addr %s242, 256
        %s244 = scalar_lea.vmem [#allocation3], %s243
        %p245 = scmp.lt.s32.totalorder %s20, 1
        %s246 = scalar_select %p245, %s20, 1
        %s247 = smul.addr %s246, 32
        %s248 = smul.addr %s247, 8
        %s249 = scalar_lea.vmem %s0, %s248
        %v250 = vld [vmem:[%s249] sm:$0xff]
        %v251 = vld [vmem:[%s249 + $0x8] sm:$0xff]
        %v252 = vld [vmem:[%s249 + $0x10] sm:$0xff]
        %v253 = vld [vmem:[%s249 + $0x18] sm:$0xff]
        %v254 = vld [vmem:[%s249 + $0x20] sm:$0xff]
        %v255 = vld [vmem:[%s249 + $0x28] sm:$0xff]
        %v256 = vld [vmem:[%s249 + $0x30] sm:$0xff]
        %v257 = vld [vmem:[%s249 + $0x38] sm:$0xff]
        %v258 = vld [vmem:[%s249 + $0x40] sm:$0xff]
        %v259 = vld [vmem:[%s249 + $0x48] sm:$0xff]
        %v260 = vld [vmem:[%s249 + $0x50] sm:$0xff]
        %v261 = vld [vmem:[%s249 + $0x58] sm:$0xff]
        %v262 = vld [vmem:[%s249 + $0x60] sm:$0xff]
        %v263 = vld [vmem:[%s249 + $0x68] sm:$0xff]
        %v264 = vld [vmem:[%s249 + $0x70] sm:$0xff]
        %v265 = vld [vmem:[%s249 + $0x78] sm:$0xff]
        %v266 = vld [vmem:[%s249 + $0x80] sm:$0xff]
        %v267 = vld [vmem:[%s249 + $0x88] sm:$0xff]
        %v268 = vld [vmem:[%s249 + $0x90] sm:$0xff]
        %v269 = vld [vmem:[%s249 + $0x98] sm:$0xff]
        %v270 = vld [vmem:[%s249 + $0xa0] sm:$0xff]
        %v271 = vld [vmem:[%s249 + $0xa8] sm:$0xff]
        %v272 = vld [vmem:[%s249 + $0xb0] sm:$0xff]
        %v273 = vld [vmem:[%s249 + $0xb8] sm:$0xff]
        %v274 = vld [vmem:[%s249 + $0xc0] sm:$0xff]
        %v275 = vld [vmem:[%s249 + $0xc8] sm:$0xff]
        %v276 = vld [vmem:[%s249 + $0xd0] sm:$0xff]
        %v277 = vld [vmem:[%s249 + $0xd8] sm:$0xff]
        %v278 = vld [vmem:[%s249 + $0xe0] sm:$0xff]
        %v279 = vld [vmem:[%s249 + $0xe8] sm:$0xff]
        %v280 = vld [vmem:[%s249 + $0xf0] sm:$0xff]
        %v281 = vld [vmem:[%s249 + $0xf8] sm:$0xff]
        %v282 = vld [vmem:[%s1] sm:$0xff]
        %v283 = vld [vmem:[%s1 + $0x8] sm:$0xff]
        %v284 = vld [vmem:[%s1 + $0x10] sm:$0xff]
        %v285 = vld [vmem:[%s1 + $0x18] sm:$0xff]
        %vm286 = vcmask 130048
        %v288 = vsel %vm286, %v250, 0
        %v291 = vsel %vm286, %v251, 0
        %v294 = vsel %vm286, %v252, 0
        %v297 = vsel %vm286, %v253, 0
        %v300 = vsel %vm286, %v254, 0
        %v303 = vsel %vm286, %v255, 0
        %v306 = vsel %vm286, %v256, 0
        %v309 = vsel %vm286, %v257, 0
        %v312 = vsel %vm286, %v258, 0
        %v315 = vsel %vm286, %v259, 0
        %v318 = vsel %vm286, %v260, 0
        %v321 = vsel %vm286, %v261, 0
        %v324 = vsel %vm286, %v262, 0
        %v327 = vsel %vm286, %v263, 0
        %v330 = vsel %vm286, %v264, 0
        %v333 = vsel %vm286, %v265, 0
        %v336 = vsel %vm286, %v266, 0
        %v339 = vsel %vm286, %v267, 0
        %v342 = vsel %vm286, %v268, 0
        %v345 = vsel %vm286, %v269, 0
        %v348 = vsel %vm286, %v270, 0
        %v351 = vsel %vm286, %v271, 0
        %v354 = vsel %vm286, %v272, 0
        %v357 = vsel %vm286, %v273, 0
        %v360 = vsel %vm286, %v274, 0
        %v363 = vsel %vm286, %v275, 0
        %v366 = vsel %vm286, %v276, 0
        %v369 = vsel %vm286, %v277, 0
        %v372 = vsel %vm286, %v278, 0
        %v375 = vsel %vm286, %v279, 0
        %v378 = vsel %vm286, %v280, 0
        %v381 = vsel %vm286, %v281, 0
        %383 = vmatpush.msra.mxu0 0.0
        %384 = vmatpush.msra.mxu0 0.0
        %385 = vmatpush.msra.mxu0 0.0
        %386 = vmatpush.msra.mxu0 0.0
        %387 = vmatpush.msra.mxu0 0.0
        %388 = vmatpush.msra.mxu0 0.0
        %389 = vmatpush.msra.mxu0 0.0
        %390 = vmatpush.msra.mxu0 0.0
        %391 = vmatpush.msra.mxu0 0.0
        %392 = vmatpush.msra.mxu0 0.0
        %393 = vmatpush.msra.mxu0 0.0
        %394 = vmatpush.msra.mxu0 0.0
        %395 = vmatpush.msra.mxu0 0.0
        %396 = vmatpush.msra.mxu0 0.0
        %397 = vmatpush.msra.mxu0 %v284
        %398 = vmatpush.msra.mxu0 %v282
        %399 = vmatmul.f32.gmra.mxu0 %v288
        %v400 = vpop.f32.mrf.mxu0
        %v401 = vadd.f32 0.0, %v400
        %402 = vmatmul.f32.gmra.mxu0 %v291
        %v403 = vpop.f32.mrf.mxu0
        %v404 = vadd.f32 0.0, %v403
        %405 = vmatmul.f32.gmra.mxu0 %v294
        %v406 = vpop.f32.mrf.mxu0
        %v407 = vadd.f32 0.0, %v406
        %408 = vmatmul.f32.gmra.mxu0 %v297
        %v409 = vpop.f32.mrf.mxu0
        %v410 = vadd.f32 0.0, %v409
        %411 = vmatmul.f32.gmra.mxu0 %v300
        %v412 = vpop.f32.mrf.mxu0
        %v413 = vadd.f32 0.0, %v412
        %414 = vmatmul.f32.gmra.mxu0 %v303
        %v415 = vpop.f32.mrf.mxu0
        %v416 = vadd.f32 0.0, %v415
        %417 = vmatmul.f32.gmra.mxu0 %v306
        %v418 = vpop.f32.mrf.mxu0
        %v419 = vadd.f32 0.0, %v418
        %420 = vmatmul.f32.gmra.mxu0 %v309
        %v421 = vpop.f32.mrf.mxu0
        %v422 = vadd.f32 0.0, %v421
        %423 = vmatmul.f32.gmra.mxu0 %v312
        %v424 = vpop.f32.mrf.mxu0
        %v425 = vadd.f32 0.0, %v424
        %426 = vmatmul.f32.gmra.mxu0 %v315
        %v427 = vpop.f32.mrf.mxu0
        %v428 = vadd.f32 0.0, %v427
        %429 = vmatmul.f32.gmra.mxu0 %v318
        %v430 = vpop.f32.mrf.mxu0
        %v431 = vadd.f32 0.0, %v430
        %432 = vmatmul.f32.gmra.mxu0 %v321
        %v433 = vpop.f32.mrf.mxu0
        %v434 = vadd.f32 0.0, %v433
        %435 = vmatmul.f32.gmra.mxu0 %v324
        %v436 = vpop.f32.mrf.mxu0
        %v437 = vadd.f32 0.0, %v436
        %438 = vmatmul.f32.gmra.mxu0 %v327
        %v439 = vpop.f32.mrf.mxu0
        %v440 = vadd.f32 0.0, %v439
        %441 = vmatmul.f32.gmra.mxu0 %v330
        %v442 = vpop.f32.mrf.mxu0
        %v443 = vadd.f32 0.0, %v442
        %444 = vmatmul.f32.gmra.mxu0 %v333
        %v445 = vpop.f32.mrf.mxu0
        %v446 = vadd.f32 0.0, %v445
        %447 = vmatmul.f32.gmra.mxu0 %v336
        %v448 = vpop.f32.mrf.mxu0
        %v449 = vadd.f32 0.0, %v448
        %450 = vmatmul.f32.gmra.mxu0 %v339
        %v451 = vpop.f32.mrf.mxu0
        %v452 = vadd.f32 0.0, %v451
        %453 = vmatmul.f32.gmra.mxu0 %v342
        %v454 = vpop.f32.mrf.mxu0
        %v455 = vadd.f32 0.0, %v454
        %456 = vmatmul.f32.gmra.mxu0 %v345
        %v457 = vpop.f32.mrf.mxu0
        %v458 = vadd.f32 0.0, %v457
        %459 = vmatmul.f32.gmra.mxu0 %v348
        %v460 = vpop.f32.mrf.mxu0
        %v461 = vadd.f32 0.0, %v460
        %462 = vmatmul.f32.gmra.mxu0 %v351
        %v463 = vpop.f32.mrf.mxu0
        %v464 = vadd.f32 0.0, %v463
        %465 = vmatmul.f32.gmra.mxu0 %v354
        %v466 = vpop.f32.mrf.mxu0
        %v467 = vadd.f32 0.0, %v466
        %468 = vmatmul.f32.gmra.mxu0 %v357
        %v469 = vpop.f32.mrf.mxu0
        %v470 = vadd.f32 0.0, %v469
        %471 = vmatmul.f32.gmra.mxu0 %v360
        %v472 = vpop.f32.mrf.mxu0
        %v473 = vadd.f32 0.0, %v472
        %474 = vmatmul.f32.gmra.mxu0 %v363
        %v475 = vpop.f32.mrf.mxu0
        %v476 = vadd.f32 0.0, %v475
        %477 = vmatmul.f32.gmra.mxu0 %v366
        %v478 = vpop.f32.mrf.mxu0
        %v479 = vadd.f32 0.0, %v478
        %480 = vmatmul.f32.gmra.mxu0 %v369
        %v481 = vpop.f32.mrf.mxu0
        %v482 = vadd.f32 0.0, %v481
        %483 = vmatmul.f32.gmra.mxu0 %v372
        %v484 = vpop.f32.mrf.mxu0
        %v485 = vadd.f32 0.0, %v484
        %486 = vmatmul.f32.gmra.mxu0 %v375
        %v487 = vpop.f32.mrf.mxu0
        %v488 = vadd.f32 0.0, %v487
        %489 = vmatmul.f32.gmra.mxu0 %v378
        %v490 = vpop.f32.mrf.mxu0
        %v491 = vadd.f32 0.0, %v490
        %492 = vmatmul.f32.gmra.mxu0 %v381
        %v493 = vpop.f32.mrf.mxu0
        %v494 = vadd.f32 0.0, %v493
        %495 = vdwg.mxu0
        %496 = vmatpush.msra.mxu0 0.0
        %497 = vmatpush.msra.mxu0 0.0
        %498 = vmatpush.msra.mxu0 0.0
        %499 = vmatpush.msra.mxu0 0.0
        %500 = vmatpush.msra.mxu0 0.0
        %501 = vmatpush.msra.mxu0 0.0
        %502 = vmatpush.msra.mxu0 0.0
        %503 = vmatpush.msra.mxu0 0.0
        %504 = vmatpush.msra.mxu0 0.0
        %505 = vmatpush.msra.mxu0 0.0
        %506 = vmatpush.msra.mxu0 0.0
        %507 = vmatpush.msra.mxu0 0.0
        %508 = vmatpush.msra.mxu0 0.0
        %509 = vmatpush.msra.mxu0 0.0
        %510 = vmatpush.msra.mxu0 %v285
        %511 = vmatpush.msra.mxu0 %v283
        %512 = vmatmul.f32.gmra.mxu0 %v288
        %v513 = vpop.f32.mrf.mxu0
        %v514 = vadd.f32 0.0, %v513
        %515 = vmatmul.f32.gmra.mxu0 %v291
        %v516 = vpop.f32.mrf.mxu0
        %v517 = vadd.f32 0.0, %v516
        %518 = vmatmul.f32.gmra.mxu0 %v294
        %v519 = vpop.f32.mrf.mxu0
        %v520 = vadd.f32 0.0, %v519
        %521 = vmatmul.f32.gmra.mxu0 %v297
        %v522 = vpop.f32.mrf.mxu0
        %v523 = vadd.f32 0.0, %v522
        %524 = vmatmul.f32.gmra.mxu0 %v300
        %v525 = vpop.f32.mrf.mxu0
        %v526 = vadd.f32 0.0, %v525
        %527 = vmatmul.f32.gmra.mxu0 %v303
        %v528 = vpop.f32.mrf.mxu0
        %v529 = vadd.f32 0.0, %v528
        %530 = vmatmul.f32.gmra.mxu0 %v306
        %v531 = vpop.f32.mrf.mxu0
        %v532 = vadd.f32 0.0, %v531
        %533 = vmatmul.f32.gmra.mxu0 %v309
        %v534 = vpop.f32.mrf.mxu0
        %v535 = vadd.f32 0.0, %v534
        %536 = vmatmul.f32.gmra.mxu0 %v312
        %v537 = vpop.f32.mrf.mxu0
        %v538 = vadd.f32 0.0, %v537
        %539 = vmatmul.f32.gmra.mxu0 %v315
        %v540 = vpop.f32.mrf.mxu0
        %v541 = vadd.f32 0.0, %v540
        %542 = vmatmul.f32.gmra.mxu0 %v318
        %v543 = vpop.f32.mrf.mxu0
        %v544 = vadd.f32 0.0, %v543
        %545 = vmatmul.f32.gmra.mxu0 %v321
        %v546 = vpop.f32.mrf.mxu0
        %v547 = vadd.f32 0.0, %v546
        %548 = vmatmul.f32.gmra.mxu0 %v324
        %v549 = vpop.f32.mrf.mxu0
        %v550 = vadd.f32 0.0, %v549
        %551 = vmatmul.f32.gmra.mxu0 %v327
        %v552 = vpop.f32.mrf.mxu0
        %v553 = vadd.f32 0.0, %v552
        %554 = vmatmul.f32.gmra.mxu0 %v330
        %v555 = vpop.f32.mrf.mxu0
        %v556 = vadd.f32 0.0, %v555
        %557 = vmatmul.f32.gmra.mxu0 %v333
        %v558 = vpop.f32.mrf.mxu0
        %v559 = vadd.f32 0.0, %v558
        %560 = vmatmul.f32.gmra.mxu0 %v336
        %v561 = vpop.f32.mrf.mxu0
        %v562 = vadd.f32 0.0, %v561
        %563 = vmatmul.f32.gmra.mxu0 %v339
        %v564 = vpop.f32.mrf.mxu0
        %v565 = vadd.f32 0.0, %v564
        %566 = vmatmul.f32.gmra.mxu0 %v342
        %v567 = vpop.f32.mrf.mxu0
        %v568 = vadd.f32 0.0, %v567
        %569 = vmatmul.f32.gmra.mxu0 %v345
        %v570 = vpop.f32.mrf.mxu0
        %v571 = vadd.f32 0.0, %v570
        %572 = vmatmul.f32.gmra.mxu0 %v348
        %v573 = vpop.f32.mrf.mxu0
        %v574 = vadd.f32 0.0, %v573
        %575 = vmatmul.f32.gmra.mxu0 %v351
        %v576 = vpop.f32.mrf.mxu0
        %v577 = vadd.f32 0.0, %v576
        %578 = vmatmul.f32.gmra.mxu0 %v354
        %v579 = vpop.f32.mrf.mxu0
        %v580 = vadd.f32 0.0, %v579
        %581 = vmatmul.f32.gmra.mxu0 %v357
        %v582 = vpop.f32.mrf.mxu0
        %v583 = vadd.f32 0.0, %v582
        %584 = vmatmul.f32.gmra.mxu0 %v360
        %v585 = vpop.f32.mrf.mxu0
        %v586 = vadd.f32 0.0, %v585
        %587 = vmatmul.f32.gmra.mxu0 %v363
        %v588 = vpop.f32.mrf.mxu0
        %v589 = vadd.f32 0.0, %v588
        %590 = vmatmul.f32.gmra.mxu0 %v366
        %v591 = vpop.f32.mrf.mxu0
        %v592 = vadd.f32 0.0, %v591
        %593 = vmatmul.f32.gmra.mxu0 %v369
        %v594 = vpop.f32.mrf.mxu0
        %v595 = vadd.f32 0.0, %v594
        %596 = vmatmul.f32.gmra.mxu0 %v372
        %v597 = vpop.f32.mrf.mxu0
        %v598 = vadd.f32 0.0, %v597
        %599 = vmatmul.f32.gmra.mxu0 %v375
        %v600 = vpop.f32.mrf.mxu0
        %v601 = vadd.f32 0.0, %v600
        %602 = vmatmul.f32.gmra.mxu0 %v378
        %v603 = vpop.f32.mrf.mxu0
        %v604 = vadd.f32 0.0, %v603
        %605 = vmatmul.f32.gmra.mxu0 %v381
        %v606 = vpop.f32.mrf.mxu0
        %v607 = vadd.f32 0.0, %v606
        %608 = vdwg.mxu0
        %609 = vst [vmem:[#allocation2] sm:$0xff] %v401
        %610 = vst [vmem:[#allocation2 + $0x8] sm:$0xff] %v514
        %611 = vst [vmem:[#allocation2 + $0x10] sm:$0xff] %v404
        %612 = vst [vmem:[#allocation2 + $0x18] sm:$0xff] %v517
        %613 = vst [vmem:[#allocation2 + $0x20] sm:$0xff] %v407
        %614 = vst [vmem:[#allocation2 + $0x28] sm:$0xff] %v520
        %615 = vst [vmem:[#allocation2 + $0x30] sm:$0xff] %v410
        %616 = vst [vmem:[#allocation2 + $0x38] sm:$0xff] %v523
        %617 = vst [vmem:[#allocation2 + $0x40] sm:$0xff] %v413
        %618 = vst [vmem:[#allocation2 + $0x48] sm:$0xff] %v526
        %619 = vst [vmem:[#allocation2 + $0x50] sm:$0xff] %v416
        %620 = vst [vmem:[#allocation2 + $0x58] sm:$0xff] %v529
        %621 = vst [vmem:[#allocation2 + $0x60] sm:$0xff] %v419
        %622 = vst [vmem:[#allocation2 + $0x68] sm:$0xff] %v532
        %623 = vst [vmem:[#allocation2 + $0x70] sm:$0xff] %v422
        %624 = vst [vmem:[#allocation2 + $0x78] sm:$0xff] %v535
        %625 = vst [vmem:[#allocation2 + $0x80] sm:$0xff] %v425
        %626 = vst [vmem:[#allocation2 + $0x88] sm:$0xff] %v538
        %627 = vst [vmem:[#allocation2 + $0x90] sm:$0xff] %v428
        %628 = vst [vmem:[#allocation2 + $0x98] sm:$0xff] %v541
        %629 = vst [vmem:[#allocation2 + $0xa0] sm:$0xff] %v431
        %630 = vst [vmem:[#allocation2 + $0xa8] sm:$0xff] %v544
        %631 = vst [vmem:[#allocation2 + $0xb0] sm:$0xff] %v434
        %632 = vst [vmem:[#allocation2 + $0xb8] sm:$0xff] %v547
        %633 = vst [vmem:[#allocation2 + $0xc0] sm:$0xff] %v437
        %634 = vst [vmem:[#allocation2 + $0xc8] sm:$0xff] %v550
        %635 = vst [vmem:[#allocation2 + $0xd0] sm:$0xff] %v440
        %636 = vst [vmem:[#allocation2 + $0xd8] sm:$0xff] %v553
        %637 = vst [vmem:[#allocation2 + $0xe0] sm:$0xff] %v443
        %638 = vst [vmem:[#allocation2 + $0xe8] sm:$0xff] %v556
        %639 = vst [vmem:[#allocation2 + $0xf0] sm:$0xff] %v446
        %640 = vst [vmem:[#allocation2 + $0xf8] sm:$0xff] %v559
        %641 = vst [vmem:[#allocation2 + $0x100] sm:$0xff] %v449
        %642 = vst [vmem:[#allocation2 + $0x108] sm:$0xff] %v562
        %643 = vst [vmem:[#allocation2 + $0x110] sm:$0xff] %v452
        %644 = vst [vmem:[#allocation2 + $0x118] sm:$0xff] %v565
        %645 = vst [vmem:[#allocation2 + $0x120] sm:$0xff] %v455
        %646 = vst [vmem:[#allocation2 + $0x128] sm:$0xff] %v568
        %647 = vst [vmem:[#allocation2 + $0x130] sm:$0xff] %v458
        %648 = vst [vmem:[#allocation2 + $0x138] sm:$0xff] %v571
        %649 = vst [vmem:[#allocation2 + $0x140] sm:$0xff] %v461
        %650 = vst [vmem:[#allocation2 + $0x148] sm:$0xff] %v574
        %651 = vst [vmem:[#allocation2 + $0x150] sm:$0xff] %v464
        %652 = vst [vmem:[#allocation2 + $0x158] sm:$0xff] %v577
        %653 = vst [vmem:[#allocation2 + $0x160] sm:$0xff] %v467
        %654 = vst [vmem:[#allocation2 + $0x168] sm:$0xff] %v580
        %655 = vst [vmem:[#allocation2 + $0x170] sm:$0xff] %v470
        %656 = vst [vmem:[#allocation2 + $0x178] sm:$0xff] %v583
        %657 = vst [vmem:[#allocation2 + $0x180] sm:$0xff] %v473
        %658 = vst [vmem:[#allocation2 + $0x188] sm:$0xff] %v586
        %659 = vst [vmem:[#allocation2 + $0x190] sm:$0xff] %v476
        %660 = vst [vmem:[#allocation2 + $0x198] sm:$0xff] %v589
        %661 = vst [vmem:[#allocation2 + $0x1a0] sm:$0xff] %v479
        %662 = vst [vmem:[#allocation2 + $0x1a8] sm:$0xff] %v592
        %663 = vst [vmem:[#allocation2 + $0x1b0] sm:$0xff] %v482
        %664 = vst [vmem:[#allocation2 + $0x1b8] sm:$0xff] %v595
        %665 = vst [vmem:[#allocation2 + $0x1c0] sm:$0xff] %v485
        %666 = vst [vmem:[#allocation2 + $0x1c8] sm:$0xff] %v598
        %667 = vst [vmem:[#allocation2 + $0x1d0] sm:$0xff] %v488
        %668 = vst [vmem:[#allocation2 + $0x1d8] sm:$0xff] %v601
        %669 = vst [vmem:[#allocation2 + $0x1e0] sm:$0xff] %v491
        %670 = vst [vmem:[#allocation2 + $0x1e8] sm:$0xff] %v604
        %671 = vst [vmem:[#allocation2 + $0x1f0] sm:$0xff] %v494
        %672 = vst [vmem:[#allocation2 + $0x1f8] sm:$0xff] %v607
        %v673 = vld [vmem:[#allocation2] sm:$0xff]
        %v674 = vld [vmem:[#allocation2 + $0x8] sm:$0xff]
        %v675 = vld [vmem:[#allocation2 + $0x10] sm:$0xff]
        %v676 = vld [vmem:[#allocation2 + $0x18] sm:$0xff]
        %v677 = vld [vmem:[#allocation2 + $0x20] sm:$0xff]
        %v678 = vld [vmem:[#allocation2 + $0x28] sm:$0xff]
        %v679 = vld [vmem:[#allocation2 + $0x30] sm:$0xff]
        %v680 = vld [vmem:[#allocation2 + $0x38] sm:$0xff]
        %v681 = vld [vmem:[#allocation2 + $0x40] sm:$0xff]
        %v682 = vld [vmem:[#allocation2 + $0x48] sm:$0xff]
        %v683 = vld [vmem:[#allocation2 + $0x50] sm:$0xff]
        %v684 = vld [vmem:[#allocation2 + $0x58] sm:$0xff]
        %v685 = vld [vmem:[#allocation2 + $0x60] sm:$0xff]
        %v686 = vld [vmem:[#allocation2 + $0x68] sm:$0xff]
        %v687 = vld [vmem:[#allocation2 + $0x70] sm:$0xff]
        %v688 = vld [vmem:[#allocation2 + $0x78] sm:$0xff]
        %v689 = vld [vmem:[#allocation2 + $0x80] sm:$0xff]
        %v690 = vld [vmem:[#allocation2 + $0x88] sm:$0xff]
        %v691 = vld [vmem:[#allocation2 + $0x90] sm:$0xff]
        %v692 = vld [vmem:[#allocation2 + $0x98] sm:$0xff]
        %v693 = vld [vmem:[#allocation2 + $0xa0] sm:$0xff]
        %v694 = vld [vmem:[#allocation2 + $0xa8] sm:$0xff]
        %v695 = vld [vmem:[#allocation2 + $0xb0] sm:$0xff]
        %v696 = vld [vmem:[#allocation2 + $0xb8] sm:$0xff]
        %v697 = vld [vmem:[#allocation2 + $0xc0] sm:$0xff]
        %v698 = vld [vmem:[#allocation2 + $0xc8] sm:$0xff]
        %v699 = vld [vmem:[#allocation2 + $0xd0] sm:$0xff]
        %v700 = vld [vmem:[#allocation2 + $0xd8] sm:$0xff]
        %v701 = vld [vmem:[#allocation2 + $0xe0] sm:$0xff]
        %v702 = vld [vmem:[#allocation2 + $0xe8] sm:$0xff]
        %v703 = vld [vmem:[#allocation2 + $0xf0] sm:$0xff]
        %v704 = vld [vmem:[#allocation2 + $0xf8] sm:$0xff]
        %v705 = vld [vmem:[#allocation2 + $0x100] sm:$0xff]
        %v706 = vld [vmem:[#allocation2 + $0x108] sm:$0xff]
        %v707 = vld [vmem:[#allocation2 + $0x110] sm:$0xff]
        %v708 = vld [vmem:[#allocation2 + $0x118] sm:$0xff]
        %v709 = vld [vmem:[#allocation2 + $0x120] sm:$0xff]
        %v710 = vld [vmem:[#allocation2 + $0x128] sm:$0xff]
        %v711 = vld [vmem:[#allocation2 + $0x130] sm:$0xff]
        %v712 = vld [vmem:[#allocation2 + $0x138] sm:$0xff]
        %v713 = vld [vmem:[#allocation2 + $0x140] sm:$0xff]
        %v714 = vld [vmem:[#allocation2 + $0x148] sm:$0xff]
        %v715 = vld [vmem:[#allocation2 + $0x150] sm:$0xff]
        %v716 = vld [vmem:[#allocation2 + $0x158] sm:$0xff]
        %v717 = vld [vmem:[#allocation2 + $0x160] sm:$0xff]
        %v718 = vld [vmem:[#allocation2 + $0x168] sm:$0xff]
        %v719 = vld [vmem:[#allocation2 + $0x170] sm:$0xff]
        %v720 = vld [vmem:[#allocation2 + $0x178] sm:$0xff]
        %v721 = vld [vmem:[#allocation2 + $0x180] sm:$0xff]
        %v722 = vld [vmem:[#allocation2 + $0x188] sm:$0xff]
        %v723 = vld [vmem:[#allocation2 + $0x190] sm:$0xff]
        %v724 = vld [vmem:[#allocation2 + $0x198] sm:$0xff]
        %v725 = vld [vmem:[#allocation2 + $0x1a0] sm:$0xff]
        %v726 = vld [vmem:[#allocation2 + $0x1a8] sm:$0xff]
        %v727 = vld [vmem:[#allocation2 + $0x1b0] sm:$0xff]
        %v728 = vld [vmem:[#allocation2 + $0x1b8] sm:$0xff]
        %v729 = vld [vmem:[#allocation2 + $0x1c0] sm:$0xff]
        %v730 = vld [vmem:[#allocation2 + $0x1c8] sm:$0xff]
        %v731 = vld [vmem:[#allocation2 + $0x1d0] sm:$0xff]
        %v732 = vld [vmem:[#allocation2 + $0x1d8] sm:$0xff]
        %v733 = vld [vmem:[#allocation2 + $0x1e0] sm:$0xff]
        %v734 = vld [vmem:[#allocation2 + $0x1e8] sm:$0xff]
        %v735 = vld [vmem:[#allocation2 + $0x1f0] sm:$0xff]
        %v736 = vld [vmem:[#allocation2 + $0x1f8] sm:$0xff]
        %v737 = vadd.f32 %v673, %v675
        %v738 = vadd.f32 %v737, %v677
        %v739 = vadd.f32 %v738, %v679
        %v740 = vadd.f32 %v739, %v681
        %v741 = vadd.f32 %v740, %v683
        %v742 = vadd.f32 %v741, %v685
        %v743 = vadd.f32 %v742, %v687
        %v744 = vadd.f32 %v743, %v689
        %v745 = vadd.f32 %v744, %v691
        %v746 = vadd.f32 %v745, %v693
        %v747 = vadd.f32 %v746, %v695
        %v748 = vadd.f32 %v747, %v697
        %v749 = vadd.f32 %v748, %v699
        %v750 = vadd.f32 %v749, %v701
        %v751 = vadd.f32 %v750, %v703
        %v752 = vadd.f32 %v751, %v705
        %v753 = vadd.f32 %v752, %v707
        %v754 = vadd.f32 %v753, %v709
        %v755 = vadd.f32 %v754, %v711
        %v756 = vadd.f32 %v755, %v713
        %v757 = vadd.f32 %v756, %v715
        %v758 = vadd.f32 %v757, %v717
        %v759 = vadd.f32 %v758, %v719
        %v760 = vadd.f32 %v759, %v721
        %v761 = vadd.f32 %v760, %v723
        %v762 = vadd.f32 %v761, %v725
        %v763 = vadd.f32 %v762, %v727
        %v764 = vadd.f32 %v763, %v729
        %v765 = vadd.f32 %v764, %v731
        %v766 = vadd.f32 %v765, %v733
        %v767 = vadd.f32 %v766, %v735
        %v768 = vrot.slane %v767, 4
        %v769 = vadd.f32 %v767, %v768
        %v770 = vrot.slane %v769, 2
        %v771 = vadd.f32 %v769, %v770
        %v772 = vrot.slane %v771, 1
        %v773 = vadd.f32 %v771, %v772
        %v774 = vadd.f32 %v674, %v676
        %v775 = vadd.f32 %v774, %v678
        %v776 = vadd.f32 %v775, %v680
        %v777 = vadd.f32 %v776, %v682
        %v778 = vadd.f32 %v777, %v684
        %v779 = vadd.f32 %v778, %v686
        %v780 = vadd.f32 %v779, %v688
        %v781 = vadd.f32 %v780, %v690
        %v782 = vadd.f32 %v781, %v692
        %v783 = vadd.f32 %v782, %v694
        %v784 = vadd.f32 %v783, %v696
        %v785 = vadd.f32 %v784, %v698
        %v786 = vadd.f32 %v785, %v700
        %v787 = vadd.f32 %v786, %v702
        %v788 = vadd.f32 %v787, %v704
        %v789 = vadd.f32 %v788, %v706
        %v790 = vadd.f32 %v789, %v708
        %v791 = vadd.f32 %v790, %v710
        %v792 = vadd.f32 %v791, %v712
        %v793 = vadd.f32 %v792, %v714
        %v794 = vadd.f32 %v793, %v716
        %v795 = vadd.f32 %v794, %v718
        %v796 = vadd.f32 %v795, %v720
        %v797 = vadd.f32 %v796, %v722
        %v798 = vadd.f32 %v797, %v724
        %v799 = vadd.f32 %v798, %v726
        %v800 = vadd.f32 %v799, %v728
        %v801 = vadd.f32 %v800, %v730
        %v802 = vadd.f32 %v801, %v732
        %v803 = vadd.f32 %v802, %v734
        %v804 = vadd.f32 %v803, %v736
        %v805 = vrot.slane %v804, 4
        %v806 = vadd.f32 %v804, %v805
        %v807 = vrot.slane %v806, 2
        %v808 = vadd.f32 %v806, %v807
        %v809 = vrot.slane %v808, 1
        %v810 = vadd.f32 %v808, %v809
        %v811 = vmul.f32 %v673, %v673
        %v812 = vmul.f32 %v674, %v674
        %v813 = vmul.f32 %v675, %v675
        %v814 = vmul.f32 %v676, %v676
        %v815 = vmul.f32 %v677, %v677
        %v816 = vmul.f32 %v678, %v678
        %v817 = vmul.f32 %v679, %v679
        %v818 = vmul.f32 %v680, %v680
        %v819 = vmul.f32 %v681, %v681
        %v820 = vmul.f32 %v682, %v682
        %v821 = vmul.f32 %v683, %v683
        %v822 = vmul.f32 %v684, %v684
        %v823 = vmul.f32 %v685, %v685
        %v824 = vmul.f32 %v686, %v686
        %v825 = vmul.f32 %v687, %v687
        %v826 = vmul.f32 %v688, %v688
        %v827 = vmul.f32 %v689, %v689
        %v828 = vmul.f32 %v690, %v690
        %v829 = vmul.f32 %v691, %v691
        %v830 = vmul.f32 %v692, %v692
        %v831 = vmul.f32 %v693, %v693
        %v832 = vmul.f32 %v694, %v694
        %v833 = vmul.f32 %v695, %v695
        %v834 = vmul.f32 %v696, %v696
        %v835 = vmul.f32 %v697, %v697
        %v836 = vmul.f32 %v698, %v698
        %v837 = vmul.f32 %v699, %v699
        %v838 = vmul.f32 %v700, %v700
        %v839 = vmul.f32 %v701, %v701
        %v840 = vmul.f32 %v702, %v702
        %v841 = vmul.f32 %v703, %v703
        %v842 = vmul.f32 %v704, %v704
        %v843 = vmul.f32 %v705, %v705
        %v844 = vmul.f32 %v706, %v706
        %v845 = vmul.f32 %v707, %v707
        %v846 = vmul.f32 %v708, %v708
        %v847 = vmul.f32 %v709, %v709
        %v848 = vmul.f32 %v710, %v710
        %v849 = vmul.f32 %v711, %v711
        %v850 = vmul.f32 %v712, %v712
        %v851 = vmul.f32 %v713, %v713
        %v852 = vmul.f32 %v714, %v714
        %v853 = vmul.f32 %v715, %v715
        %v854 = vmul.f32 %v716, %v716
        %v855 = vmul.f32 %v717, %v717
        %v856 = vmul.f32 %v718, %v718
        %v857 = vmul.f32 %v719, %v719
        %v858 = vmul.f32 %v720, %v720
        %v859 = vmul.f32 %v721, %v721
        %v860 = vmul.f32 %v722, %v722
        %v861 = vmul.f32 %v723, %v723
        %v862 = vmul.f32 %v724, %v724
        %v863 = vmul.f32 %v725, %v725
        %v864 = vmul.f32 %v726, %v726
        %v865 = vmul.f32 %v727, %v727
        %v866 = vmul.f32 %v728, %v728
        %v867 = vmul.f32 %v729, %v729
        %v868 = vmul.f32 %v730, %v730
        %v869 = vmul.f32 %v731, %v731
        %v870 = vmul.f32 %v732, %v732
        %v871 = vmul.f32 %v733, %v733
        %v872 = vmul.f32 %v734, %v734
        %v873 = vmul.f32 %v735, %v735
        %v874 = vmul.f32 %v736, %v736
        %v875 = vadd.f32 %v811, %v813
        %v876 = vadd.f32 %v875, %v815
        %v877 = vadd.f32 %v876, %v817
        %v878 = vadd.f32 %v877, %v819
        %v879 = vadd.f32 %v878, %v821
        %v880 = vadd.f32 %v879, %v823
        %v881 = vadd.f32 %v880, %v825
        %v882 = vadd.f32 %v881, %v827
        %v883 = vadd.f32 %v882, %v829
        %v884 = vadd.f32 %v883, %v831
        %v885 = vadd.f32 %v884, %v833
        %v886 = vadd.f32 %v885, %v835
        %v887 = vadd.f32 %v886, %v837
        %v888 = vadd.f32 %v887, %v839
        %v889 = vadd.f32 %v888, %v841
        %v890 = vadd.f32 %v889, %v843
        %v891 = vadd.f32 %v890, %v845
        %v892 = vadd.f32 %v891, %v847
        %v893 = vadd.f32 %v892, %v849
        %v894 = vadd.f32 %v893, %v851
        %v895 = vadd.f32 %v894, %v853
        %v896 = vadd.f32 %v895, %v855
        %v897 = vadd.f32 %v896, %v857
        %v898 = vadd.f32 %v897, %v859
        %v899 = vadd.f32 %v898, %v861
        %v900 = vadd.f32 %v899, %v863
        %v901 = vadd.f32 %v900, %v865
        %v902 = vadd.f32 %v901, %v867
        %v903 = vadd.f32 %v902, %v869
        %v904 = vadd.f32 %v903, %v871
        %v905 = vadd.f32 %v904, %v873
        %v906 = vrot.slane %v905, 4
        %v907 = vadd.f32 %v905, %v906
        %v908 = vrot.slane %v907, 2
        %v909 = vadd.f32 %v907, %v908
        %v910 = vrot.slane %v909, 1
        %v911 = vadd.f32 %v909, %v910
        %v912 = vadd.f32 %v812, %v814
        %v913 = vadd.f32 %v912, %v816
        %v914 = vadd.f32 %v913, %v818
        %v915 = vadd.f32 %v914, %v820
        %v916 = vadd.f32 %v915, %v822
        %v917 = vadd.f32 %v916, %v824
        %v918 = vadd.f32 %v917, %v826
        %v919 = vadd.f32 %v918, %v828
        %v920 = vadd.f32 %v919, %v830
        %v921 = vadd.f32 %v920, %v832
        %v922 = vadd.f32 %v921, %v834
        %v923 = vadd.f32 %v922, %v836
        %v924 = vadd.f32 %v923, %v838
        %v925 = vadd.f32 %v924, %v840
        %v926 = vadd.f32 %v925, %v842
        %v927 = vadd.f32 %v926, %v844
        %v928 = vadd.f32 %v927, %v846
        %v929 = vadd.f32 %v928, %v848
        %v930 = vadd.f32 %v929, %v850
        %v931 = vadd.f32 %v930, %v852
        %v932 = vadd.f32 %v931, %v854
        %v933 = vadd.f32 %v932, %v856
        %v934 = vadd.f32 %v933, %v858
        %v935 = vadd.f32 %v934, %v860
        %v936 = vadd.f32 %v935, %v862
        %v937 = vadd.f32 %v936, %v864
        %v938 = vadd.f32 %v937, %v866
        %v939 = vadd.f32 %v938, %v868
        %v940 = vadd.f32 %v939, %v870
        %v941 = vadd.f32 %v940, %v872
        %v942 = vadd.f32 %v941, %v874
        %v943 = vrot.slane %v942, 4
        %v944 = vadd.f32 %v942, %v943
        %v945 = vrot.slane %v944, 2
        %v946 = vadd.f32 %v944, %v945
        %v947 = vrot.slane %v946, 1
        %v948 = vadd.f32 %v946, %v947
        %v949 = vld [vmem:[%s2] sm:$0x3]
        %v950 = vmul.f32 %v949, 256.0
        %v952 = vperm.slane %v950, 0
        %v953 = vperm.slane %v950, 1
        %v956 = vadd.f32 %v773, %v952
        %v957 = vadd.f32 %v810, %v953
        %v958 = vmul.f32 %v949, 2.0
        %v961 = vrot.slane %v810, 7
        %vm962 = vcmask 1040384
        %v963 = vsel %vm962, %v773, %v961
        %v965 = vmul.f32 %v958, %v963
        %v967 = vperm.slane %v965, 0
        %v968 = vperm.slane %v965, 1
        %v971 = vadd.f32 %v911, %v967
        %v972 = vadd.f32 %v948, %v968
        %v973 = vmul.f32 %v949, %v949
        %v974 = vmul.f32 %v973, 256.0
        %v976 = vperm.slane %v974, 0
        %v977 = vperm.slane %v974, 1
        %v980 = vadd.f32 %v971, %v976
        %v981 = vadd.f32 %v972, %v977
        %v982 = vld [vmem:[%s5] sm:$0xff]
        %v983 = vld [vmem:[%s5 + $0x8] sm:$0xff]
        %v984 = vld [vmem:[%s5 + $0x10] sm:$0xff]
        %v985 = vld [vmem:[%s5 + $0x18] sm:$0xff]
        %v986 = vld [vmem:[%s5 + $0x20] sm:$0xff]
        %v987 = vld [vmem:[%s5 + $0x28] sm:$0xff]
        %v988 = vld [vmem:[%s5 + $0x30] sm:$0xff]
        %v989 = vld [vmem:[%s5 + $0x38] sm:$0xff]
        %v990 = vld [vmem:[%s5 + $0x40] sm:$0xff]
        %v991 = vld [vmem:[%s5 + $0x48] sm:$0xff]
        %v992 = vld [vmem:[%s5 + $0x50] sm:$0xff]
        %v993 = vld [vmem:[%s5 + $0x58] sm:$0xff]
        %v994 = vld [vmem:[%s5 + $0x60] sm:$0xff]
        %v995 = vld [vmem:[%s5 + $0x68] sm:$0xff]
        %v996 = vld [vmem:[%s5 + $0x70] sm:$0xff]
        %v997 = vld [vmem:[%s5 + $0x78] sm:$0xff]
        %v998 = vld [vmem:[%s5 + $0x80] sm:$0xff]
        %v999 = vld [vmem:[%s5 + $0x88] sm:$0xff]
        %v1000 = vld [vmem:[%s5 + $0x90] sm:$0xff]
        %v1001 = vld [vmem:[%s5 + $0x98] sm:$0xff]
        %v1002 = vld [vmem:[%s5 + $0xa0] sm:$0xff]
        %v1003 = vld [vmem:[%s5 + $0xa8] sm:$0xff]
        %v1004 = vld [vmem:[%s5 + $0xb0] sm:$0xff]
        %v1005 = vld [vmem:[%s5 + $0xb8] sm:$0xff]
        %v1006 = vld [vmem:[%s5 + $0xc0] sm:$0xff]
        %v1007 = vld [vmem:[%s5 + $0xc8] sm:$0xff]
        %v1008 = vld [vmem:[%s5 + $0xd0] sm:$0xff]
        %v1009 = vld [vmem:[%s5 + $0xd8] sm:$0xff]
        %v1010 = vld [vmem:[%s5 + $0xe0] sm:$0xff]
        %v1011 = vld [vmem:[%s5 + $0xe8] sm:$0xff]
        %v1012 = vld [vmem:[%s5 + $0xf0] sm:$0xff]
        %v1013 = vld [vmem:[%s5 + $0xf8] sm:$0xff]
        %v1014 = vld [vmem:[%s5 + $0x100] sm:$0xff]
        %v1015 = vld [vmem:[%s5 + $0x108] sm:$0xff]
        %v1016 = vld [vmem:[%s5 + $0x110] sm:$0xff]
        %v1017 = vld [vmem:[%s5 + $0x118] sm:$0xff]
        %v1018 = vld [vmem:[%s5 + $0x120] sm:$0xff]
        %v1019 = vld [vmem:[%s5 + $0x128] sm:$0xff]
        %v1020 = vld [vmem:[%s5 + $0x130] sm:$0xff]
        %v1021 = vld [vmem:[%s5 + $0x138] sm:$0xff]
        %v1022 = vld [vmem:[%s5 + $0x140] sm:$0xff]
        %v1023 = vld [vmem:[%s5 + $0x148] sm:$0xff]
        %v1024 = vld [vmem:[%s5 + $0x150] sm:$0xff]
        %v1025 = vld [vmem:[%s5 + $0x158] sm:$0xff]
        %v1026 = vld [vmem:[%s5 + $0x160] sm:$0xff]
        %v1027 = vld [vmem:[%s5 + $0x168] sm:$0xff]
        %v1028 = vld [vmem:[%s5 + $0x170] sm:$0xff]
        %v1029 = vld [vmem:[%s5 + $0x178] sm:$0xff]
        %v1030 = vld [vmem:[%s5 + $0x180] sm:$0xff]
        %v1031 = vld [vmem:[%s5 + $0x188] sm:$0xff]
        %v1032 = vld [vmem:[%s5 + $0x190] sm:$0xff]
        %v1033 = vld [vmem:[%s5 + $0x198] sm:$0xff]
        %v1034 = vld [vmem:[%s5 + $0x1a0] sm:$0xff]
        %v1035 = vld [vmem:[%s5 + $0x1a8] sm:$0xff]
        %v1036 = vld [vmem:[%s5 + $0x1b0] sm:$0xff]
        %v1037 = vld [vmem:[%s5 + $0x1b8] sm:$0xff]
        %v1038 = vld [vmem:[%s5 + $0x1c0] sm:$0xff]
        %v1039 = vld [vmem:[%s5 + $0x1c8] sm:$0xff]
        %v1040 = vld [vmem:[%s5 + $0x1d0] sm:$0xff]
        %v1041 = vld [vmem:[%s5 + $0x1d8] sm:$0xff]
        %v1042 = vld [vmem:[%s5 + $0x1e0] sm:$0xff]
        %v1043 = vld [vmem:[%s5 + $0x1e8] sm:$0xff]
        %v1044 = vld [vmem:[%s5 + $0x1f0] sm:$0xff]
        %v1045 = vld [vmem:[%s5 + $0x1f8] sm:$0xff]
        %1046 = vmatpush.msra.mxu0 %v1012
        %1047 = vmatpush.msra.mxu0 %v1010
        %1048 = vmatpush.msra.mxu0 %v1008
        %1049 = vmatpush.msra.mxu0 %v1006
        %1050 = vmatpush.msra.mxu0 %v1004
        %1051 = vmatpush.msra.mxu0 %v1002
        %1052 = vmatpush.msra.mxu0 %v1000
        %1053 = vmatpush.msra.mxu0 %v998
        %1054 = vmatpush.msra.mxu0 %v996
        %1055 = vmatpush.msra.mxu0 %v994
        %1056 = vmatpush.msra.mxu0 %v992
        %1057 = vmatpush.msra.mxu0 %v990
        %1058 = vmatpush.msra.mxu0 %v988
        %1059 = vmatpush.msra.mxu0 %v986
        %1060 = vmatpush.msra.mxu0 %v984
        %1061 = vmatpush.msra.mxu0 %v982
        %1062 = vmatmul.f32.gmra.mxu0 %v956
        %v1063 = vpop.f32.mrf.mxu0
        %v1064 = vadd.f32 0.0, %v1063
        %1065 = vdwg.mxu0
        %1066 = vmatpush.msra.mxu0 %v1044
        %1067 = vmatpush.msra.mxu0 %v1042
        %1068 = vmatpush.msra.mxu0 %v1040
        %1069 = vmatpush.msra.mxu0 %v1038
        %1070 = vmatpush.msra.mxu0 %v1036
        %1071 = vmatpush.msra.mxu0 %v1034
        %1072 = vmatpush.msra.mxu0 %v1032
        %1073 = vmatpush.msra.mxu0 %v1030
        %1074 = vmatpush.msra.mxu0 %v1028
        %1075 = vmatpush.msra.mxu0 %v1026
        %1076 = vmatpush.msra.mxu0 %v1024
        %1077 = vmatpush.msra.mxu0 %v1022
        %1078 = vmatpush.msra.mxu0 %v1020
        %1079 = vmatpush.msra.mxu0 %v1018
        %1080 = vmatpush.msra.mxu0 %v1016
        %1081 = vmatpush.msra.mxu0 %v1014
        %1082 = vmatmul.f32.gmra.mxu0 %v957
        %v1083 = vpop.f32.mrf.mxu0
        %v1084 = vadd.f32 %v1064, %v1083
        %1085 = vdwg.mxu0
        %1086 = vmatpush.msra.mxu0 %v1013
        %1087 = vmatpush.msra.mxu0 %v1011
        %1088 = vmatpush.msra.mxu0 %v1009
        %1089 = vmatpush.msra.mxu0 %v1007
        %1090 = vmatpush.msra.mxu0 %v1005
        %1091 = vmatpush.msra.mxu0 %v1003
        %1092 = vmatpush.msra.mxu0 %v1001
        %1093 = vmatpush.msra.mxu0 %v999
        %1094 = vmatpush.msra.mxu0 %v997
        %1095 = vmatpush.msra.mxu0 %v995
        %1096 = vmatpush.msra.mxu0 %v993
        %1097 = vmatpush.msra.mxu0 %v991
        %1098 = vmatpush.msra.mxu0 %v989
        %1099 = vmatpush.msra.mxu0 %v987
        %1100 = vmatpush.msra.mxu0 %v985
        %1101 = vmatpush.msra.mxu0 %v983
        %1102 = vmatmul.f32.gmra.mxu0 %v956
        %v1103 = vpop.f32.mrf.mxu0
        %v1104 = vadd.f32 0.0, %v1103
        %1105 = vdwg.mxu0
        %1106 = vmatpush.msra.mxu0 %v1045
        %1107 = vmatpush.msra.mxu0 %v1043
        %1108 = vmatpush.msra.mxu0 %v1041
        %1109 = vmatpush.msra.mxu0 %v1039
        %1110 = vmatpush.msra.mxu0 %v1037
        %1111 = vmatpush.msra.mxu0 %v1035
        %1112 = vmatpush.msra.mxu0 %v1033
        %1113 = vmatpush.msra.mxu0 %v1031
        %1114 = vmatpush.msra.mxu0 %v1029
        %1115 = vmatpush.msra.mxu0 %v1027
        %1116 = vmatpush.msra.mxu0 %v1025
        %1117 = vmatpush.msra.mxu0 %v1023
        %1118 = vmatpush.msra.mxu0 %v1021
        %1119 = vmatpush.msra.mxu0 %v1019
        %1120 = vmatpush.msra.mxu0 %v1017
        %1121 = vmatpush.msra.mxu0 %v1015
        %1122 = vmatmul.f32.gmra.mxu0 %v957
        %v1123 = vpop.f32.mrf.mxu0
        %v1124 = vadd.f32 %v1104, %v1123
        %1125 = vdwg.mxu0
        %1126 = vmatpush.msra.mxu0 %v1012
        %1127 = vmatpush.msra.mxu0 %v1010
        %1128 = vmatpush.msra.mxu0 %v1008
        %1129 = vmatpush.msra.mxu0 %v1006
        %1130 = vmatpush.msra.mxu0 %v1004
        %1131 = vmatpush.msra.mxu0 %v1002
        %1132 = vmatpush.msra.mxu0 %v1000
        %1133 = vmatpush.msra.mxu0 %v998
        %1134 = vmatpush.msra.mxu0 %v996
        %1135 = vmatpush.msra.mxu0 %v994
        %1136 = vmatpush.msra.mxu0 %v992
        %1137 = vmatpush.msra.mxu0 %v990
        %1138 = vmatpush.msra.mxu0 %v988
        %1139 = vmatpush.msra.mxu0 %v986
        %1140 = vmatpush.msra.mxu0 %v984
        %1141 = vmatpush.msra.mxu0 %v982
        %1142 = vmatmul.f32.gmra.mxu0 %v980
        %v1143 = vpop.f32.mrf.mxu0
        %v1144 = vadd.f32 0.0, %v1143
        %1145 = vdwg.mxu0
        %1146 = vmatpush.msra.mxu0 %v1044
        %1147 = vmatpush.msra.mxu0 %v1042
        %1148 = vmatpush.msra.mxu0 %v1040
        %1149 = vmatpush.msra.mxu0 %v1038
        %1150 = vmatpush.msra.mxu0 %v1036
        %1151 = vmatpush.msra.mxu0 %v1034
        %1152 = vmatpush.msra.mxu0 %v1032
        %1153 = vmatpush.msra.mxu0 %v1030
        %1154 = vmatpush.msra.mxu0 %v1028
        %1155 = vmatpush.msra.mxu0 %v1026
        %1156 = vmatpush.msra.mxu0 %v1024
        %1157 = vmatpush.msra.mxu0 %v1022
        %1158 = vmatpush.msra.mxu0 %v1020
        %1159 = vmatpush.msra.mxu0 %v1018
        %1160 = vmatpush.msra.mxu0 %v1016
        %1161 = vmatpush.msra.mxu0 %v1014
        %1162 = vmatmul.f32.gmra.mxu0 %v981
        %v1163 = vpop.f32.mrf.mxu0
        %v1164 = vadd.f32 %v1144, %v1163
        %1165 = vdwg.mxu0
        %1166 = vmatpush.msra.mxu0 %v1013
        %1167 = vmatpush.msra.mxu0 %v1011
        %1168 = vmatpush.msra.mxu0 %v1009
        %1169 = vmatpush.msra.mxu0 %v1007
        %1170 = vmatpush.msra.mxu0 %v1005
        %1171 = vmatpush.msra.mxu0 %v1003
        %1172 = vmatpush.msra.mxu0 %v1001
        %1173 = vmatpush.msra.mxu0 %v999
        %1174 = vmatpush.msra.mxu0 %v997
        %1175 = vmatpush.msra.mxu0 %v995
        %1176 = vmatpush.msra.mxu0 %v993
        %1177 = vmatpush.msra.mxu0 %v991
        %1178 = vmatpush.msra.mxu0 %v989
        %1179 = vmatpush.msra.mxu0 %v987
        %1180 = vmatpush.msra.mxu0 %v985
        %1181 = vmatpush.msra.mxu0 %v983
        %1182 = vmatmul.f32.gmra.mxu0 %v980
        %v1183 = vpop.f32.mrf.mxu0
        %v1184 = vadd.f32 0.0, %v1183
        %1185 = vdwg.mxu0
        %1186 = vmatpush.msra.mxu0 %v1045
        %1187 = vmatpush.msra.mxu0 %v1043
        %1188 = vmatpush.msra.mxu0 %v1041
        %1189 = vmatpush.msra.mxu0 %v1039
        %1190 = vmatpush.msra.mxu0 %v1037
        %1191 = vmatpush.msra.mxu0 %v1035
        %1192 = vmatpush.msra.mxu0 %v1033
        %1193 = vmatpush.msra.mxu0 %v1031
        %1194 = vmatpush.msra.mxu0 %v1029
        %1195 = vmatpush.msra.mxu0 %v1027
        %1196 = vmatpush.msra.mxu0 %v1025
        %1197 = vmatpush.msra.mxu0 %v1023
        %1198 = vmatpush.msra.mxu0 %v1021
        %1199 = vmatpush.msra.mxu0 %v1019
        %1200 = vmatpush.msra.mxu0 %v1017
        %1201 = vmatpush.msra.mxu0 %v1015
        %1202 = vmatmul.f32.gmra.mxu0 %v981
        %v1203 = vpop.f32.mrf.mxu0
        %v1204 = vadd.f32 %v1184, %v1203
        %1205 = vdwg.mxu0
        %v1206 = vmul.f32 %v1084, %v1084
        %v1207 = vmul.f32 %v1124, %v1124
        %v1208 = vsub.f32 %v1164, %v1206
        %v1209 = vsub.f32 %v1204, %v1207
        %v1210 = vmax.f32 %v1208, 0.0
        %v1211 = vmax.f32 %v1209, 0.0
        %v1212 = vadd.f32 %v1210, 1e-05
        %v1213 = vadd.f32 %v1211, 1e-05
        %v1214 = vrsqrt.pop %v1212
        %v1215 = vmul.f32 %v1214, %v1212
        %v1216 = vmul.f32 %v1215, %v1214
        %v1217 = vmul.f32 0.5, %v1216
        %v1218 = vsub.f32 1.5, %v1217
        %v1219 = vmul.f32 %v1214, %v1218
        %vm1220 = vweird.f32 %v1212
        %vm1221 = vweird.f32 %v1214
        %vm1222 = vmor %vm1220, %vm1221
        %v1223 = vsel %vm1222, %v1214, %v1219
        %v1224 = vrsqrt.pop %v1213
        %v1225 = vmul.f32 %v1224, %v1213
        %v1226 = vmul.f32 %v1225, %v1224
        %v1227 = vmul.f32 0.5, %v1226
        %v1228 = vsub.f32 1.5, %v1227
        %v1229 = vmul.f32 %v1224, %v1228
        %vm1230 = vweird.f32 %v1213
        %vm1231 = vweird.f32 %v1224
        %vm1232 = vmor %vm1230, %vm1231
        %v1233 = vsel %vm1232, %v1224, %v1229
        %v1234 = vld [vmem:[%s3] sm:$0x3]
        %v1237 = vrot.slane %v1233, 7
        %v1238 = vsel %vm962, %v1223, %v1237
        %v1240 = vmul.f32 %v1234, %v1238
        %v1241 = vld [vmem:[%s4] sm:$0x3]
        %v1244 = vrot.slane %v1124, 7
        %v1245 = vsel %vm962, %v1084, %v1244
        %v1247 = vsub.f32 %v949, %v1245
        %v1248 = vmul.f32 %v1247, %v1240
        %v1249 = vadd.f32 %v1241, %v1248
        %v1251 = vperm.slane %v1240, 0
        %v1252 = vperm.slane %v1240, 1
        %v1255 = vmul.f32 %v673, %v1251
        %v1256 = vmul.f32 %v674, %v1252
        %v1257 = vmul.f32 %v675, %v1251
        %v1258 = vmul.f32 %v676, %v1252
        %v1259 = vmul.f32 %v677, %v1251
        %v1260 = vmul.f32 %v678, %v1252
        %v1261 = vmul.f32 %v679, %v1251
        %v1262 = vmul.f32 %v680, %v1252
        %v1263 = vmul.f32 %v681, %v1251
        %v1264 = vmul.f32 %v682, %v1252
        %v1265 = vmul.f32 %v683, %v1251
        %v1266 = vmul.f32 %v684, %v1252
        %v1267 = vmul.f32 %v685, %v1251
        %v1268 = vmul.f32 %v686, %v1252
        %v1269 = vmul.f32 %v687, %v1251
        %v1270 = vmul.f32 %v688, %v1252
        %v1271 = vmul.f32 %v689, %v1251
        %v1272 = vmul.f32 %v690, %v1252
        %v1273 = vmul.f32 %v691, %v1251
        %v1274 = vmul.f32 %v692, %v1252
        %v1275 = vmul.f32 %v693, %v1251
        %v1276 = vmul.f32 %v694, %v1252
        %v1277 = vmul.f32 %v695, %v1251
        %v1278 = vmul.f32 %v696, %v1252
        %v1279 = vmul.f32 %v697, %v1251
        %v1280 = vmul.f32 %v698, %v1252
        %v1281 = vmul.f32 %v699, %v1251
        %v1282 = vmul.f32 %v700, %v1252
        %v1283 = vmul.f32 %v701, %v1251
        %v1284 = vmul.f32 %v702, %v1252
        %v1285 = vmul.f32 %v703, %v1251
        %v1286 = vmul.f32 %v704, %v1252
        %v1287 = vmul.f32 %v705, %v1251
        %v1288 = vmul.f32 %v706, %v1252
        %v1289 = vmul.f32 %v707, %v1251
        %v1290 = vmul.f32 %v708, %v1252
        %v1291 = vmul.f32 %v709, %v1251
        %v1292 = vmul.f32 %v710, %v1252
        %v1293 = vmul.f32 %v711, %v1251
        %v1294 = vmul.f32 %v712, %v1252
        %v1295 = vmul.f32 %v713, %v1251
        %v1296 = vmul.f32 %v714, %v1252
        %v1297 = vmul.f32 %v715, %v1251
        %v1298 = vmul.f32 %v716, %v1252
        %v1299 = vmul.f32 %v717, %v1251
        %v1300 = vmul.f32 %v718, %v1252
        %v1301 = vmul.f32 %v719, %v1251
        %v1302 = vmul.f32 %v720, %v1252
        %v1303 = vmul.f32 %v721, %v1251
        %v1304 = vmul.f32 %v722, %v1252
        %v1305 = vmul.f32 %v723, %v1251
        %v1306 = vmul.f32 %v724, %v1252
        %v1307 = vmul.f32 %v725, %v1251
        %v1308 = vmul.f32 %v726, %v1252
        %v1309 = vmul.f32 %v727, %v1251
        %v1310 = vmul.f32 %v728, %v1252
        %v1311 = vmul.f32 %v729, %v1251
        %v1312 = vmul.f32 %v730, %v1252
        %v1313 = vmul.f32 %v731, %v1251
        %v1314 = vmul.f32 %v732, %v1252
        %v1315 = vmul.f32 %v733, %v1251
        %v1316 = vmul.f32 %v734, %v1252
        %v1317 = vmul.f32 %v735, %v1251
        %v1318 = vmul.f32 %v736, %v1252
        %v1320 = vperm.slane %v1249, 0
        %v1321 = vperm.slane %v1249, 1
        %v1324 = vadd.f32 %v1255, %v1320
        %v1325 = vadd.f32 %v1256, %v1321
        %v1326 = vadd.f32 %v1257, %v1320
        %v1327 = vadd.f32 %v1258, %v1321
        %v1328 = vadd.f32 %v1259, %v1320
        %v1329 = vadd.f32 %v1260, %v1321
        %v1330 = vadd.f32 %v1261, %v1320
        %v1331 = vadd.f32 %v1262, %v1321
        %v1332 = vadd.f32 %v1263, %v1320
        %v1333 = vadd.f32 %v1264, %v1321
        %v1334 = vadd.f32 %v1265, %v1320
        %v1335 = vadd.f32 %v1266, %v1321
        %v1336 = vadd.f32 %v1267, %v1320
        %v1337 = vadd.f32 %v1268, %v1321
        %v1338 = vadd.f32 %v1269, %v1320
        %v1339 = vadd.f32 %v1270, %v1321
        %v1340 = vadd.f32 %v1271, %v1320
        %v1341 = vadd.f32 %v1272, %v1321
        %v1342 = vadd.f32 %v1273, %v1320
        %v1343 = vadd.f32 %v1274, %v1321
        %v1344 = vadd.f32 %v1275, %v1320
        %v1345 = vadd.f32 %v1276, %v1321
        %v1346 = vadd.f32 %v1277, %v1320
        %v1347 = vadd.f32 %v1278, %v1321
        %v1348 = vadd.f32 %v1279, %v1320
        %v1349 = vadd.f32 %v1280, %v1321
        %v1350 = vadd.f32 %v1281, %v1320
        %v1351 = vadd.f32 %v1282, %v1321
        %v1352 = vadd.f32 %v1283, %v1320
        %v1353 = vadd.f32 %v1284, %v1321
        %v1354 = vadd.f32 %v1285, %v1320
        %v1355 = vadd.f32 %v1286, %v1321
        %v1356 = vadd.f32 %v1287, %v1320
        %v1357 = vadd.f32 %v1288, %v1321
        %v1358 = vadd.f32 %v1289, %v1320
        %v1359 = vadd.f32 %v1290, %v1321
        %v1360 = vadd.f32 %v1291, %v1320
        %v1361 = vadd.f32 %v1292, %v1321
        %v1362 = vadd.f32 %v1293, %v1320
        %v1363 = vadd.f32 %v1294, %v1321
        %v1364 = vadd.f32 %v1295, %v1320
        %v1365 = vadd.f32 %v1296, %v1321
        %v1366 = vadd.f32 %v1297, %v1320
        %v1367 = vadd.f32 %v1298, %v1321
        %v1368 = vadd.f32 %v1299, %v1320
        %v1369 = vadd.f32 %v1300, %v1321
        %v1370 = vadd.f32 %v1301, %v1320
        %v1371 = vadd.f32 %v1302, %v1321
        %v1372 = vadd.f32 %v1303, %v1320
        %v1373 = vadd.f32 %v1304, %v1321
        %v1374 = vadd.f32 %v1305, %v1320
        %v1375 = vadd.f32 %v1306, %v1321
        %v1376 = vadd.f32 %v1307, %v1320
        %v1377 = vadd.f32 %v1308, %v1321
        %v1378 = vadd.f32 %v1309, %v1320
        %v1379 = vadd.f32 %v1310, %v1321
        %v1380 = vadd.f32 %v1311, %v1320
        %v1381 = vadd.f32 %v1312, %v1321
        %v1382 = vadd.f32 %v1313, %v1320
        %v1383 = vadd.f32 %v1314, %v1321
        %v1384 = vadd.f32 %v1315, %v1320
        %v1385 = vadd.f32 %v1316, %v1321
        %v1386 = vadd.f32 %v1317, %v1320
        %v1387 = vadd.f32 %v1318, %v1321
        %v1388 = vmul.f32 %v1324, 0.5
        %v1389 = vmul.f32 %v1325, 0.5
        %v1390 = vmul.f32 %v1326, 0.5
        %v1391 = vmul.f32 %v1327, 0.5
        %v1392 = vmul.f32 %v1328, 0.5
        %v1393 = vmul.f32 %v1329, 0.5
        %v1394 = vmul.f32 %v1330, 0.5
        %v1395 = vmul.f32 %v1331, 0.5
        %v1396 = vmul.f32 %v1332, 0.5
        %v1397 = vmul.f32 %v1333, 0.5
        %v1398 = vmul.f32 %v1334, 0.5
        %v1399 = vmul.f32 %v1335, 0.5
        %v1400 = vmul.f32 %v1336, 0.5
        %v1401 = vmul.f32 %v1337, 0.5
        %v1402 = vmul.f32 %v1338, 0.5
        %v1403 = vmul.f32 %v1339, 0.5
        %v1404 = vmul.f32 %v1340, 0.5
        %v1405 = vmul.f32 %v1341, 0.5
        %v1406 = vmul.f32 %v1342, 0.5
        %v1407 = vmul.f32 %v1343, 0.5
        %v1408 = vmul.f32 %v1344, 0.5
        %v1409 = vmul.f32 %v1345, 0.5
        %v1410 = vmul.f32 %v1346, 0.5
        %v1411 = vmul.f32 %v1347, 0.5
        %v1412 = vmul.f32 %v1348, 0.5
        %v1413 = vmul.f32 %v1349, 0.5
        %v1414 = vmul.f32 %v1350, 0.5
        %v1415 = vmul.f32 %v1351, 0.5
        %v1416 = vmul.f32 %v1352, 0.5
        %v1417 = vmul.f32 %v1353, 0.5
        %v1418 = vmul.f32 %v1354, 0.5
        %v1419 = vmul.f32 %v1355, 0.5
        %v1420 = vmul.f32 %v1356, 0.5
        %v1421 = vmul.f32 %v1357, 0.5
        %v1422 = vmul.f32 %v1358, 0.5
        %v1423 = vmul.f32 %v1359, 0.5
        %v1424 = vmul.f32 %v1360, 0.5
        %v1425 = vmul.f32 %v1361, 0.5
        %v1426 = vmul.f32 %v1362, 0.5
        %v1427 = vmul.f32 %v1363, 0.5
        %v1428 = vmul.f32 %v1364, 0.5
        %v1429 = vmul.f32 %v1365, 0.5
        %v1430 = vmul.f32 %v1366, 0.5
        %v1431 = vmul.f32 %v1367, 0.5
        %v1432 = vmul.f32 %v1368, 0.5
        %v1433 = vmul.f32 %v1369, 0.5
        %v1434 = vmul.f32 %v1370, 0.5
        %v1435 = vmul.f32 %v1371, 0.5
        %v1436 = vmul.f32 %v1372, 0.5
        %v1437 = vmul.f32 %v1373, 0.5
        %v1438 = vmul.f32 %v1374, 0.5
        %v1439 = vmul.f32 %v1375, 0.5
        %v1440 = vmul.f32 %v1376, 0.5
        %v1441 = vmul.f32 %v1377, 0.5
        %v1442 = vmul.f32 %v1378, 0.5
        %v1443 = vmul.f32 %v1379, 0.5
        %v1444 = vmul.f32 %v1380, 0.5
        %v1445 = vmul.f32 %v1381, 0.5
        %v1446 = vmul.f32 %v1382, 0.5
        %v1447 = vmul.f32 %v1383, 0.5
        %v1448 = vmul.f32 %v1384, 0.5
        %v1449 = vmul.f32 %v1385, 0.5
        %v1450 = vmul.f32 %v1386, 0.5
        %v1451 = vmul.f32 %v1387, 0.5
        %v1452 = vmul.f32 %v1324, 0.044715
        %v1453 = vmul.f32 %v1325, 0.044715
        %v1454 = vmul.f32 %v1326, 0.044715
        %v1455 = vmul.f32 %v1327, 0.044715
        %v1456 = vmul.f32 %v1328, 0.044715
        %v1457 = vmul.f32 %v1329, 0.044715
        %v1458 = vmul.f32 %v1330, 0.044715
        %v1459 = vmul.f32 %v1331, 0.044715
        %v1460 = vmul.f32 %v1332, 0.044715
        %v1461 = vmul.f32 %v1333, 0.044715
        %v1462 = vmul.f32 %v1334, 0.044715
        %v1463 = vmul.f32 %v1335, 0.044715
        %v1464 = vmul.f32 %v1336, 0.044715
        %v1465 = vmul.f32 %v1337, 0.044715
        %v1466 = vmul.f32 %v1338, 0.044715
        %v1467 = vmul.f32 %v1339, 0.044715
        %v1468 = vmul.f32 %v1340, 0.044715
        %v1469 = vmul.f32 %v1341, 0.044715
        %v1470 = vmul.f32 %v1342, 0.044715
        %v1471 = vmul.f32 %v1343, 0.044715
        %v1472 = vmul.f32 %v1344, 0.044715
        %v1473 = vmul.f32 %v1345, 0.044715
        %v1474 = vmul.f32 %v1346, 0.044715
        %v1475 = vmul.f32 %v1347, 0.044715
        %v1476 = vmul.f32 %v1348, 0.044715
        %v1477 = vmul.f32 %v1349, 0.044715
        %v1478 = vmul.f32 %v1350, 0.044715
        %v1479 = vmul.f32 %v1351, 0.044715
        %v1480 = vmul.f32 %v1352, 0.044715
        %v1481 = vmul.f32 %v1353, 0.044715
        %v1482 = vmul.f32 %v1354, 0.044715
        %v1483 = vmul.f32 %v1355, 0.044715
        %v1484 = vmul.f32 %v1356, 0.044715
        %v1485 = vmul.f32 %v1357, 0.044715
        %v1486 = vmul.f32 %v1358, 0.044715
        %v1487 = vmul.f32 %v1359, 0.044715
        %v1488 = vmul.f32 %v1360, 0.044715
        %v1489 = vmul.f32 %v1361, 0.044715
        %v1490 = vmul.f32 %v1362, 0.044715
        %v1491 = vmul.f32 %v1363, 0.044715
        %v1492 = vmul.f32 %v1364, 0.044715
        %v1493 = vmul.f32 %v1365, 0.044715
        %v1494 = vmul.f32 %v1366, 0.044715
        %v1495 = vmul.f32 %v1367, 0.044715
        %v1496 = vmul.f32 %v1368, 0.044715
        %v1497 = vmul.f32 %v1369, 0.044715
        %v1498 = vmul.f32 %v1370, 0.044715
        %v1499 = vmul.f32 %v1371, 0.044715
        %v1500 = vmul.f32 %v1372, 0.044715
        %v1501 = vmul.f32 %v1373, 0.044715
        %v1502 = vmul.f32 %v1374, 0.044715
        %v1503 = vmul.f32 %v1375, 0.044715
        %v1504 = vmul.f32 %v1376, 0.044715
        %v1505 = vmul.f32 %v1377, 0.044715
        %v1506 = vmul.f32 %v1378, 0.044715
        %v1507 = vmul.f32 %v1379, 0.044715
        %v1508 = vmul.f32 %v1380, 0.044715
        %v1509 = vmul.f32 %v1381, 0.044715
        %v1510 = vmul.f32 %v1382, 0.044715
        %v1511 = vmul.f32 %v1383, 0.044715
        %v1512 = vmul.f32 %v1384, 0.044715
        %v1513 = vmul.f32 %v1385, 0.044715
        %v1514 = vmul.f32 %v1386, 0.044715
        %v1515 = vmul.f32 %v1387, 0.044715
        %v1516 = vmul.f32 %v1452, %v1324
        %v1517 = vmul.f32 %v1453, %v1325
        %v1518 = vmul.f32 %v1454, %v1326
        %v1519 = vmul.f32 %v1455, %v1327
        %v1520 = vmul.f32 %v1456, %v1328
        %v1521 = vmul.f32 %v1457, %v1329
        %v1522 = vmul.f32 %v1458, %v1330
        %v1523 = vmul.f32 %v1459, %v1331
        %v1524 = vmul.f32 %v1460, %v1332
        %v1525 = vmul.f32 %v1461, %v1333
        %v1526 = vmul.f32 %v1462, %v1334
        %v1527 = vmul.f32 %v1463, %v1335
        %v1528 = vmul.f32 %v1464, %v1336
        %v1529 = vmul.f32 %v1465, %v1337
        %v1530 = vmul.f32 %v1466, %v1338
        %v1531 = vmul.f32 %v1467, %v1339
        %v1532 = vmul.f32 %v1468, %v1340
        %v1533 = vmul.f32 %v1469, %v1341
        %v1534 = vmul.f32 %v1470, %v1342
        %v1535 = vmul.f32 %v1471, %v1343
        %v1536 = vmul.f32 %v1472, %v1344
        %v1537 = vmul.f32 %v1473, %v1345
        %v1538 = vmul.f32 %v1474, %v1346
        %v1539 = vmul.f32 %v1475, %v1347
        %v1540 = vmul.f32 %v1476, %v1348
        %v1541 = vmul.f32 %v1477, %v1349
        %v1542 = vmul.f32 %v1478, %v1350
        %v1543 = vmul.f32 %v1479, %v1351
        %v1544 = vmul.f32 %v1480, %v1352
        %v1545 = vmul.f32 %v1481, %v1353
        %v1546 = vmul.f32 %v1482, %v1354
        %v1547 = vmul.f32 %v1483, %v1355
        %v1548 = vmul.f32 %v1484, %v1356
        %v1549 = vmul.f32 %v1485, %v1357
        %v1550 = vmul.f32 %v1486, %v1358
        %v1551 = vmul.f32 %v1487, %v1359
        %v1552 = vmul.f32 %v1488, %v1360
        %v1553 = vmul.f32 %v1489, %v1361
        %v1554 = vmul.f32 %v1490, %v1362
        %v1555 = vmul.f32 %v1491, %v1363
        %v1556 = vmul.f32 %v1492, %v1364
        %v1557 = vmul.f32 %v1493, %v1365
        %v1558 = vmul.f32 %v1494, %v1366
        %v1559 = vmul.f32 %v1495, %v1367
        %v1560 = vmul.f32 %v1496, %v1368
        %v1561 = vmul.f32 %v1497, %v1369
        %v1562 = vmul.f32 %v1498, %v1370
        %v1563 = vmul.f32 %v1499, %v1371
        %v1564 = vmul.f32 %v1500, %v1372
        %v1565 = vmul.f32 %v1501, %v1373
        %v1566 = vmul.f32 %v1502, %v1374
        %v1567 = vmul.f32 %v1503, %v1375
        %v1568 = vmul.f32 %v1504, %v1376
        %v1569 = vmul.f32 %v1505, %v1377
        %v1570 = vmul.f32 %v1506, %v1378
        %v1571 = vmul.f32 %v1507, %v1379
        %v1572 = vmul.f32 %v1508, %v1380
        %v1573 = vmul.f32 %v1509, %v1381
        %v1574 = vmul.f32 %v1510, %v1382
        %v1575 = vmul.f32 %v1511, %v1383
        %v1576 = vmul.f32 %v1512, %v1384
        %v1577 = vmul.f32 %v1513, %v1385
        %v1578 = vmul.f32 %v1514, %v1386
        %v1579 = vmul.f32 %v1515, %v1387
        %v1580 = vmul.f32 %v1516, %v1324
        %v1581 = vmul.f32 %v1517, %v1325
        %v1582 = vmul.f32 %v1518, %v1326
        %v1583 = vmul.f32 %v1519, %v1327
        %v1584 = vmul.f32 %v1520, %v1328
        %v1585 = vmul.f32 %v1521, %v1329
        %v1586 = vmul.f32 %v1522, %v1330
        %v1587 = vmul.f32 %v1523, %v1331
        %v1588 = vmul.f32 %v1524, %v1332
        %v1589 = vmul.f32 %v1525, %v1333
        %v1590 = vmul.f32 %v1526, %v1334
        %v1591 = vmul.f32 %v1527, %v1335
        %v1592 = vmul.f32 %v1528, %v1336
        %v1593 = vmul.f32 %v1529, %v1337
        %v1594 = vmul.f32 %v1530, %v1338
        %v1595 = vmul.f32 %v1531, %v1339
        %v1596 = vmul.f32 %v1532, %v1340
        %v1597 = vmul.f32 %v1533, %v1341
        %v1598 = vmul.f32 %v1534, %v1342
        %v1599 = vmul.f32 %v1535, %v1343
        %v1600 = vmul.f32 %v1536, %v1344
        %v1601 = vmul.f32 %v1537, %v1345
        %v1602 = vmul.f32 %v1538, %v1346
        %v1603 = vmul.f32 %v1539, %v1347
        %v1604 = vmul.f32 %v1540, %v1348
        %v1605 = vmul.f32 %v1541, %v1349
        %v1606 = vmul.f32 %v1542, %v1350
        %v1607 = vmul.f32 %v1543, %v1351
        %v1608 = vmul.f32 %v1544, %v1352
        %v1609 = vmul.f32 %v1545, %v1353
        %v1610 = vmul.f32 %v1546, %v1354
        %v1611 = vmul.f32 %v1547, %v1355
        %v1612 = vmul.f32 %v1548, %v1356
        %v1613 = vmul.f32 %v1549, %v1357
        %v1614 = vmul.f32 %v1550, %v1358
        %v1615 = vmul.f32 %v1551, %v1359
        %v1616 = vmul.f32 %v1552, %v1360
        %v1617 = vmul.f32 %v1553, %v1361
        %v1618 = vmul.f32 %v1554, %v1362
        %v1619 = vmul.f32 %v1555, %v1363
        %v1620 = vmul.f32 %v1556, %v1364
        %v1621 = vmul.f32 %v1557, %v1365
        %v1622 = vmul.f32 %v1558, %v1366
        %v1623 = vmul.f32 %v1559, %v1367
        %v1624 = vmul.f32 %v1560, %v1368
        %v1625 = vmul.f32 %v1561, %v1369
        %v1626 = vmul.f32 %v1562, %v1370
        %v1627 = vmul.f32 %v1563, %v1371
        %v1628 = vmul.f32 %v1564, %v1372
        %v1629 = vmul.f32 %v1565, %v1373
        %v1630 = vmul.f32 %v1566, %v1374
        %v1631 = vmul.f32 %v1567, %v1375
        %v1632 = vmul.f32 %v1568, %v1376
        %v1633 = vmul.f32 %v1569, %v1377
        %v1634 = vmul.f32 %v1570, %v1378
        %v1635 = vmul.f32 %v1571, %v1379
        %v1636 = vmul.f32 %v1572, %v1380
        %v1637 = vmul.f32 %v1573, %v1381
        %v1638 = vmul.f32 %v1574, %v1382
        %v1639 = vmul.f32 %v1575, %v1383
        %v1640 = vmul.f32 %v1576, %v1384
        %v1641 = vmul.f32 %v1577, %v1385
        %v1642 = vmul.f32 %v1578, %v1386
        %v1643 = vmul.f32 %v1579, %v1387
        %v1644 = vadd.f32 %v1324, %v1580
        %v1645 = vadd.f32 %v1325, %v1581
        %v1646 = vadd.f32 %v1326, %v1582
        %v1647 = vadd.f32 %v1327, %v1583
        %v1648 = vadd.f32 %v1328, %v1584
        %v1649 = vadd.f32 %v1329, %v1585
        %v1650 = vadd.f32 %v1330, %v1586
        %v1651 = vadd.f32 %v1331, %v1587
        %v1652 = vadd.f32 %v1332, %v1588
        %v1653 = vadd.f32 %v1333, %v1589
        %v1654 = vadd.f32 %v1334, %v1590
        %v1655 = vadd.f32 %v1335, %v1591
        %v1656 = vadd.f32 %v1336, %v1592
        %v1657 = vadd.f32 %v1337, %v1593
        %v1658 = vadd.f32 %v1338, %v1594
        %v1659 = vadd.f32 %v1339, %v1595
        %v1660 = vadd.f32 %v1340, %v1596
        %v1661 = vadd.f32 %v1341, %v1597
        %v1662 = vadd.f32 %v1342, %v1598
        %v1663 = vadd.f32 %v1343, %v1599
        %v1664 = vadd.f32 %v1344, %v1600
        %v1665 = vadd.f32 %v1345, %v1601
        %v1666 = vadd.f32 %v1346, %v1602
        %v1667 = vadd.f32 %v1347, %v1603
        %v1668 = vadd.f32 %v1348, %v1604
        %v1669 = vadd.f32 %v1349, %v1605
        %v1670 = vadd.f32 %v1350, %v1606
        %v1671 = vadd.f32 %v1351, %v1607
        %v1672 = vadd.f32 %v1352, %v1608
        %v1673 = vadd.f32 %v1353, %v1609
        %v1674 = vadd.f32 %v1354, %v1610
        %v1675 = vadd.f32 %v1355, %v1611
        %v1676 = vadd.f32 %v1356, %v1612
        %v1677 = vadd.f32 %v1357, %v1613
        %v1678 = vadd.f32 %v1358, %v1614
        %v1679 = vadd.f32 %v1359, %v1615
        %v1680 = vadd.f32 %v1360, %v1616
        %v1681 = vadd.f32 %v1361, %v1617
        %v1682 = vadd.f32 %v1362, %v1618
        %v1683 = vadd.f32 %v1363, %v1619
        %v1684 = vadd.f32 %v1364, %v1620
        %v1685 = vadd.f32 %v1365, %v1621
        %v1686 = vadd.f32 %v1366, %v1622
        %v1687 = vadd.f32 %v1367, %v1623
        %v1688 = vadd.f32 %v1368, %v1624
        %v1689 = vadd.f32 %v1369, %v1625
        %v1690 = vadd.f32 %v1370, %v1626
        %v1691 = vadd.f32 %v1371, %v1627
        %v1692 = vadd.f32 %v1372, %v1628
        %v1693 = vadd.f32 %v1373, %v1629
        %v1694 = vadd.f32 %v1374, %v1630
        %v1695 = vadd.f32 %v1375, %v1631
        %v1696 = vadd.f32 %v1376, %v1632
        %v1697 = vadd.f32 %v1377, %v1633
        %v1698 = vadd.f32 %v1378, %v1634
        %v1699 = vadd.f32 %v1379, %v1635
        %v1700 = vadd.f32 %v1380, %v1636
        %v1701 = vadd.f32 %v1381, %v1637
        %v1702 = vadd.f32 %v1382, %v1638
        %v1703 = vadd.f32 %v1383, %v1639
        %v1704 = vadd.f32 %v1384, %v1640
        %v1705 = vadd.f32 %v1385, %v1641
        %v1706 = vadd.f32 %v1386, %v1642
        %v1707 = vadd.f32 %v1387, %v1643
        %v1708 = vmul.f32 %v1644, 0.7978846
        %v1709 = vmul.f32 %v1645, 0.7978846
        %v1710 = vmul.f32 %v1646, 0.7978846
        %v1711 = vmul.f32 %v1647, 0.7978846
        %v1712 = vmul.f32 %v1648, 0.7978846
        %v1713 = vmul.f32 %v1649, 0.7978846
        %v1714 = vmul.f32 %v1650, 0.7978846
        %v1715 = vmul.f32 %v1651, 0.7978846
        %v1716 = vmul.f32 %v1652, 0.7978846
        %v1717 = vmul.f32 %v1653, 0.7978846
        %v1718 = vmul.f32 %v1654, 0.7978846
        %v1719 = vmul.f32 %v1655, 0.7978846
        %v1720 = vmul.f32 %v1656, 0.7978846
        %v1721 = vmul.f32 %v1657, 0.7978846
        %v1722 = vmul.f32 %v1658, 0.7978846
        %v1723 = vmul.f32 %v1659, 0.7978846
        %v1724 = vmul.f32 %v1660, 0.7978846
        %v1725 = vmul.f32 %v1661, 0.7978846
        %v1726 = vmul.f32 %v1662, 0.7978846
        %v1727 = vmul.f32 %v1663, 0.7978846
        %v1728 = vmul.f32 %v1664, 0.7978846
        %v1729 = vmul.f32 %v1665, 0.7978846
        %v1730 = vmul.f32 %v1666, 0.7978846
        %v1731 = vmul.f32 %v1667, 0.7978846
        %v1732 = vmul.f32 %v1668, 0.7978846
        %v1733 = vmul.f32 %v1669, 0.7978846
        %v1734 = vmul.f32 %v1670, 0.7978846
        %v1735 = vmul.f32 %v1671, 0.7978846
        %v1736 = vmul.f32 %v1672, 0.7978846
        %v1737 = vmul.f32 %v1673, 0.7978846
        %v1738 = vmul.f32 %v1674, 0.7978846
        %v1739 = vmul.f32 %v1675, 0.7978846
        %v1740 = vmul.f32 %v1676, 0.7978846
        %v1741 = vmul.f32 %v1677, 0.7978846
        %v1742 = vmul.f32 %v1678, 0.7978846
        %v1743 = vmul.f32 %v1679, 0.7978846
        %v1744 = vmul.f32 %v1680, 0.7978846
        %v1745 = vmul.f32 %v1681, 0.7978846
        %v1746 = vmul.f32 %v1682, 0.7978846
        %v1747 = vmul.f32 %v1683, 0.7978846
        %v1748 = vmul.f32 %v1684, 0.7978846
        %v1749 = vmul.f32 %v1685, 0.7978846
        %v1750 = vmul.f32 %v1686, 0.7978846
        %v1751 = vmul.f32 %v1687, 0.7978846
        %v1752 = vmul.f32 %v1688, 0.7978846
        %v1753 = vmul.f32 %v1689, 0.7978846
        %v1754 = vmul.f32 %v1690, 0.7978846
        %v1755 = vmul.f32 %v1691, 0.7978846
        %v1756 = vmul.f32 %v1692, 0.7978846
        %v1757 = vmul.f32 %v1693, 0.7978846
        %v1758 = vmul.f32 %v1694, 0.7978846
        %v1759 = vmul.f32 %v1695, 0.7978846
        %v1760 = vmul.f32 %v1696, 0.7978846
        %v1761 = vmul.f32 %v1697, 0.7978846
        %v1762 = vmul.f32 %v1698, 0.7978846
        %v1763 = vmul.f32 %v1699, 0.7978846
        %v1764 = vmul.f32 %v1700, 0.7978846
        %v1765 = vmul.f32 %v1701, 0.7978846
        %v1766 = vmul.f32 %v1702, 0.7978846
        %v1767 = vmul.f32 %v1703, 0.7978846
        %v1768 = vmul.f32 %v1704, 0.7978846
        %v1769 = vmul.f32 %v1705, 0.7978846
        %v1770 = vmul.f32 %v1706, 0.7978846
        %v1771 = vmul.f32 %v1707, 0.7978846
        %v1772 = vtanh.pop %v1708
        %v1773 = vtanh.pop %v1709
        %v1774 = vtanh.pop %v1710
        %v1775 = vtanh.pop %v1711
        %v1776 = vtanh.pop %v1712
        %v1777 = vtanh.pop %v1713
        %v1778 = vtanh.pop %v1714
        %v1779 = vtanh.pop %v1715
        %v1780 = vtanh.pop %v1716
        %v1781 = vtanh.pop %v1717
        %v1782 = vtanh.pop %v1718
        %v1783 = vtanh.pop %v1719
        %v1784 = vtanh.pop %v1720
        %v1785 = vtanh.pop %v1721
        %v1786 = vtanh.pop %v1722
        %v1787 = vtanh.pop %v1723
        %v1788 = vtanh.pop %v1724
        %v1789 = vtanh.pop %v1725
        %v1790 = vtanh.pop %v1726
        %v1791 = vtanh.pop %v1727
        %v1792 = vtanh.pop %v1728
        %v1793 = vtanh.pop %v1729
        %v1794 = vtanh.pop %v1730
        %v1795 = vtanh.pop %v1731
        %v1796 = vtanh.pop %v1732
        %v1797 = vtanh.pop %v1733
        %v1798 = vtanh.pop %v1734
        %v1799 = vtanh.pop %v1735
        %v1800 = vtanh.pop %v1736
        %v1801 = vtanh.pop %v1737
        %v1802 = vtanh.pop %v1738
        %v1803 = vtanh.pop %v1739
        %v1804 = vtanh.pop %v1740
        %v1805 = vtanh.pop %v1741
        %v1806 = vtanh.pop %v1742
        %v1807 = vtanh.pop %v1743
        %v1808 = vtanh.pop %v1744
        %v1809 = vtanh.pop %v1745
        %v1810 = vtanh.pop %v1746
        %v1811 = vtanh.pop %v1747
        %v1812 = vtanh.pop %v1748
        %v1813 = vtanh.pop %v1749
        %v1814 = vtanh.pop %v1750
        %v1815 = vtanh.pop %v1751
        %v1816 = vtanh.pop %v1752
        %v1817 = vtanh.pop %v1753
        %v1818 = vtanh.pop %v1754
        %v1819 = vtanh.pop %v1755
        %v1820 = vtanh.pop %v1756
        %v1821 = vtanh.pop %v1757
        %v1822 = vtanh.pop %v1758
        %v1823 = vtanh.pop %v1759
        %v1824 = vtanh.pop %v1760
        %v1825 = vtanh.pop %v1761
        %v1826 = vtanh.pop %v1762
        %v1827 = vtanh.pop %v1763
        %v1828 = vtanh.pop %v1764
        %v1829 = vtanh.pop %v1765
        %v1830 = vtanh.pop %v1766
        %v1831 = vtanh.pop %v1767
        %v1832 = vtanh.pop %v1768
        %v1833 = vtanh.pop %v1769
        %v1834 = vtanh.pop %v1770
        %v1835 = vtanh.pop %v1771
        %v1836 = vadd.f32 %v1772, 1.0
        %v1837 = vadd.f32 %v1773, 1.0
        %v1838 = vadd.f32 %v1774, 1.0
        %v1839 = vadd.f32 %v1775, 1.0
        %v1840 = vadd.f32 %v1776, 1.0
        %v1841 = vadd.f32 %v1777, 1.0
        %v1842 = vadd.f32 %v1778, 1.0
        %v1843 = vadd.f32 %v1779, 1.0
        %v1844 = vadd.f32 %v1780, 1.0
        %v1845 = vadd.f32 %v1781, 1.0
        %v1846 = vadd.f32 %v1782, 1.0
        %v1847 = vadd.f32 %v1783, 1.0
        %v1848 = vadd.f32 %v1784, 1.0
        %v1849 = vadd.f32 %v1785, 1.0
        %v1850 = vadd.f32 %v1786, 1.0
        %v1851 = vadd.f32 %v1787, 1.0
        %v1852 = vadd.f32 %v1788, 1.0
        %v1853 = vadd.f32 %v1789, 1.0
        %v1854 = vadd.f32 %v1790, 1.0
        %v1855 = vadd.f32 %v1791, 1.0
        %v1856 = vadd.f32 %v1792, 1.0
        %v1857 = vadd.f32 %v1793, 1.0
        %v1858 = vadd.f32 %v1794, 1.0
        %v1859 = vadd.f32 %v1795, 1.0
        %v1860 = vadd.f32 %v1796, 1.0
        %v1861 = vadd.f32 %v1797, 1.0
        %v1862 = vadd.f32 %v1798, 1.0
        %v1863 = vadd.f32 %v1799, 1.0
        %v1864 = vadd.f32 %v1800, 1.0
        %v1865 = vadd.f32 %v1801, 1.0
        %v1866 = vadd.f32 %v1802, 1.0
        %v1867 = vadd.f32 %v1803, 1.0
        %v1868 = vadd.f32 %v1804, 1.0
        %v1869 = vadd.f32 %v1805, 1.0
        %v1870 = vadd.f32 %v1806, 1.0
        %v1871 = vadd.f32 %v1807, 1.0
        %v1872 = vadd.f32 %v1808, 1.0
        %v1873 = vadd.f32 %v1809, 1.0
        %v1874 = vadd.f32 %v1810, 1.0
        %v1875 = vadd.f32 %v1811, 1.0
        %v1876 = vadd.f32 %v1812, 1.0
        %v1877 = vadd.f32 %v1813, 1.0
        %v1878 = vadd.f32 %v1814, 1.0
        %v1879 = vadd.f32 %v1815, 1.0
        %v1880 = vadd.f32 %v1816, 1.0
        %v1881 = vadd.f32 %v1817, 1.0
        %v1882 = vadd.f32 %v1818, 1.0
        %v1883 = vadd.f32 %v1819, 1.0
        %v1884 = vadd.f32 %v1820, 1.0
        %v1885 = vadd.f32 %v1821, 1.0
        %v1886 = vadd.f32 %v1822, 1.0
        %v1887 = vadd.f32 %v1823, 1.0
        %v1888 = vadd.f32 %v1824, 1.0
        %v1889 = vadd.f32 %v1825, 1.0
        %v1890 = vadd.f32 %v1826, 1.0
        %v1891 = vadd.f32 %v1827, 1.0
        %v1892 = vadd.f32 %v1828, 1.0
        %v1893 = vadd.f32 %v1829, 1.0
        %v1894 = vadd.f32 %v1830, 1.0
        %v1895 = vadd.f32 %v1831, 1.0
        %v1896 = vadd.f32 %v1832, 1.0
        %v1897 = vadd.f32 %v1833, 1.0
        %v1898 = vadd.f32 %v1834, 1.0
        %v1899 = vadd.f32 %v1835, 1.0
        %v1900 = vmul.f32 %v1388, %v1836
        %v1901 = vmul.f32 %v1389, %v1837
        %v1902 = vmul.f32 %v1390, %v1838
        %v1903 = vmul.f32 %v1391, %v1839
        %v1904 = vmul.f32 %v1392, %v1840
        %v1905 = vmul.f32 %v1393, %v1841
        %v1906 = vmul.f32 %v1394, %v1842
        %v1907 = vmul.f32 %v1395, %v1843
        %v1908 = vmul.f32 %v1396, %v1844
        %v1909 = vmul.f32 %v1397, %v1845
        %v1910 = vmul.f32 %v1398, %v1846
        %v1911 = vmul.f32 %v1399, %v1847
        %v1912 = vmul.f32 %v1400, %v1848
        %v1913 = vmul.f32 %v1401, %v1849
        %v1914 = vmul.f32 %v1402, %v1850
        %v1915 = vmul.f32 %v1403, %v1851
        %v1916 = vmul.f32 %v1404, %v1852
        %v1917 = vmul.f32 %v1405, %v1853
        %v1918 = vmul.f32 %v1406, %v1854
        %v1919 = vmul.f32 %v1407, %v1855
        %v1920 = vmul.f32 %v1408, %v1856
        %v1921 = vmul.f32 %v1409, %v1857
        %v1922 = vmul.f32 %v1410, %v1858
        %v1923 = vmul.f32 %v1411, %v1859
        %v1924 = vmul.f32 %v1412, %v1860
        %v1925 = vmul.f32 %v1413, %v1861
        %v1926 = vmul.f32 %v1414, %v1862
        %v1927 = vmul.f32 %v1415, %v1863
        %v1928 = vmul.f32 %v1416, %v1864
        %v1929 = vmul.f32 %v1417, %v1865
        %v1930 = vmul.f32 %v1418, %v1866
        %v1931 = vmul.f32 %v1419, %v1867
        %v1932 = vmul.f32 %v1420, %v1868
        %v1933 = vmul.f32 %v1421, %v1869
        %v1934 = vmul.f32 %v1422, %v1870
        %v1935 = vmul.f32 %v1423, %v1871
        %v1936 = vmul.f32 %v1424, %v1872
        %v1937 = vmul.f32 %v1425, %v1873
        %v1938 = vmul.f32 %v1426, %v1874
        %v1939 = vmul.f32 %v1427, %v1875
        %v1940 = vmul.f32 %v1428, %v1876
        %v1941 = vmul.f32 %v1429, %v1877
        %v1942 = vmul.f32 %v1430, %v1878
        %v1943 = vmul.f32 %v1431, %v1879
        %v1944 = vmul.f32 %v1432, %v1880
        %v1945 = vmul.f32 %v1433, %v1881
        %v1946 = vmul.f32 %v1434, %v1882
        %v1947 = vmul.f32 %v1435, %v1883
        %v1948 = vmul.f32 %v1436, %v1884
        %v1949 = vmul.f32 %v1437, %v1885
        %v1950 = vmul.f32 %v1438, %v1886
        %v1951 = vmul.f32 %v1439, %v1887
        %v1952 = vmul.f32 %v1440, %v1888
        %v1953 = vmul.f32 %v1441, %v1889
        %v1954 = vmul.f32 %v1442, %v1890
        %v1955 = vmul.f32 %v1443, %v1891
        %v1956 = vmul.f32 %v1444, %v1892
        %v1957 = vmul.f32 %v1445, %v1893
        %v1958 = vmul.f32 %v1446, %v1894
        %v1959 = vmul.f32 %v1447, %v1895
        %v1960 = vmul.f32 %v1448, %v1896
        %v1961 = vmul.f32 %v1449, %v1897
        %v1962 = vmul.f32 %v1450, %v1898
        %v1963 = vmul.f32 %v1451, %v1899
        %v1964 = vpack.c.bf16 %v1901, %v1900
        %v1965 = vpack.c.bf16 %v1903, %v1902
        %v1966 = vpack.c.bf16 %v1905, %v1904
        %v1967 = vpack.c.bf16 %v1907, %v1906
        %v1968 = vpack.c.bf16 %v1909, %v1908
        %v1969 = vpack.c.bf16 %v1911, %v1910
        %v1970 = vpack.c.bf16 %v1913, %v1912
        %v1971 = vpack.c.bf16 %v1915, %v1914
        %v1972 = vpack.c.bf16 %v1917, %v1916
        %v1973 = vpack.c.bf16 %v1919, %v1918
        %v1974 = vpack.c.bf16 %v1921, %v1920
        %v1975 = vpack.c.bf16 %v1923, %v1922
        %v1976 = vpack.c.bf16 %v1925, %v1924
        %v1977 = vpack.c.bf16 %v1927, %v1926
        %v1978 = vpack.c.bf16 %v1929, %v1928
        %v1979 = vpack.c.bf16 %v1931, %v1930
        %v1980 = vpack.c.bf16 %v1933, %v1932
        %v1981 = vpack.c.bf16 %v1935, %v1934
        %v1982 = vpack.c.bf16 %v1937, %v1936
        %v1983 = vpack.c.bf16 %v1939, %v1938
        %v1984 = vpack.c.bf16 %v1941, %v1940
        %v1985 = vpack.c.bf16 %v1943, %v1942
        %v1986 = vpack.c.bf16 %v1945, %v1944
        %v1987 = vpack.c.bf16 %v1947, %v1946
        %v1988 = vpack.c.bf16 %v1949, %v1948
        %v1989 = vpack.c.bf16 %v1951, %v1950
        %v1990 = vpack.c.bf16 %v1953, %v1952
        %v1991 = vpack.c.bf16 %v1955, %v1954
        %v1992 = vpack.c.bf16 %v1957, %v1956
        %v1993 = vpack.c.bf16 %v1959, %v1958
        %v1994 = vpack.c.bf16 %v1961, %v1960
        %v1995 = vpack.c.bf16 %v1963, %v1962
        %1996 = vst [vmem:[%s244] sm:$0xff] %v1964
        %1997 = vst [vmem:[%s244 + $0x8] sm:$0xff] %v1965
        %1998 = vst [vmem:[%s244 + $0x10] sm:$0xff] %v1966
        %1999 = vst [vmem:[%s244 + $0x18] sm:$0xff] %v1967
        %2000 = vst [vmem:[%s244 + $0x20] sm:$0xff] %v1968
        %2001 = vst [vmem:[%s244 + $0x28] sm:$0xff] %v1969
        %2002 = vst [vmem:[%s244 + $0x30] sm:$0xff] %v1970
        %2003 = vst [vmem:[%s244 + $0x38] sm:$0xff] %v1971
        %2004 = vst [vmem:[%s244 + $0x40] sm:$0xff] %v1972
        %2005 = vst [vmem:[%s244 + $0x48] sm:$0xff] %v1973
        %2006 = vst [vmem:[%s244 + $0x50] sm:$0xff] %v1974
        %2007 = vst [vmem:[%s244 + $0x58] sm:$0xff] %v1975
        %2008 = vst [vmem:[%s244 + $0x60] sm:$0xff] %v1976
        %2009 = vst [vmem:[%s244 + $0x68] sm:$0xff] %v1977
        %2010 = vst [vmem:[%s244 + $0x70] sm:$0xff] %v1978
        %2011 = vst [vmem:[%s244 + $0x78] sm:$0xff] %v1979
        %2012 = vst [vmem:[%s244 + $0x80] sm:$0xff] %v1980
        %2013 = vst [vmem:[%s244 + $0x88] sm:$0xff] %v1981
        %2014 = vst [vmem:[%s244 + $0x90] sm:$0xff] %v1982
        %2015 = vst [vmem:[%s244 + $0x98] sm:$0xff] %v1983
        %2016 = vst [vmem:[%s244 + $0xa0] sm:$0xff] %v1984
        %2017 = vst [vmem:[%s244 + $0xa8] sm:$0xff] %v1985
        %2018 = vst [vmem:[%s244 + $0xb0] sm:$0xff] %v1986
        %2019 = vst [vmem:[%s244 + $0xb8] sm:$0xff] %v1987
        %2020 = vst [vmem:[%s244 + $0xc0] sm:$0xff] %v1988
        %2021 = vst [vmem:[%s244 + $0xc8] sm:$0xff] %v1989
        %2022 = vst [vmem:[%s244 + $0xd0] sm:$0xff] %v1990
        %2023 = vst [vmem:[%s244 + $0xd8] sm:$0xff] %v1991
        %2024 = vst [vmem:[%s244 + $0xe0] sm:$0xff] %v1992
        %2025 = vst [vmem:[%s244 + $0xe8] sm:$0xff] %v1993
        %2026 = vst [vmem:[%s244 + $0xf0] sm:$0xff] %v1994
        %2027 = vst [vmem:[%s244 + $0xf8] sm:$0xff] %v1995
        %s2028 = sand.u32 %s159, 1
        %s2029 = scalar_lea.sflag [#allocation4], %s2028
        %s2030 = sand.u32 %s159, 1
        %s2031 = smul.addr %s2030, 256
        %s2032 = scalar_lea.vmem [#allocation3], %s2031
        // Predicated region
        $region45: #{tpu_custom_call.1} parent=43 // pred_check
          %p2033 = pneg %p169
        $region46: #{tpu_custom_call.1} parent=43 // pred_check_branch
          %2035 = sbr.rel (%p2033) target = $region48
        $region47: #{tpu_custom_call.1} parent=43 // pred_region
          %2037 = vsyncadd %s2029, 0
          %s2038 = smul.addr %s20, 64
          %s2039 = smul.addr %s2038, 4
          %s2040 = scalar_lea.hbm %s6, %s2039
          %s2041 = sshll.u32 %s2032, 4
          %s2042 = int_to_ptr.vmem [resolvable:$true] %s2041
          %s2043 = sshll.u32 %s2040, 4
          %s2044 = int_to_ptr.hbm [resolvable:$true] %s2043
          %2049 = dma.vmem_to_hbm [thread:$0]  %s2042, 4096, %s2044, %s2029, 128, 128, 8
        $region48: #{tpu_custom_call.1} parent=43 // pred_fallthru
          _
      $region44: #{tpu_custom_call.1} parent=5 // pred_fallthru
        _
      %p2050 = scmp.le.s32.totalorder 2, %s15
      // Predicated region
      $region49: #{tpu_custom_call.1} parent=5 // pred_check
        %p2051 = pneg %p2050
      $region50: #{tpu_custom_call.1} parent=5 // pred_check_branch
        %2053 = sbr.rel (%p2051) target = $region52
      $region51: #{tpu_custom_call.1} parent=5 // pred_region
        %s2054 = ssub.s32 %s15, 2
        // Predicated region
        $region53: #{tpu_custom_call.1} parent=51 // pred_check
          %p2055 = pneg %p175
        $region54: #{tpu_custom_call.1} parent=51 // pred_check_branch
          %2057 = sbr.rel (%p2055) target = $region56
        $region55: #{tpu_custom_call.1} parent=51 // pred_region
          %s2058 = sand.u32 %s160, 1
          %s2059 = scalar_lea.sflag [#allocation4], %s2058
          %s2060 = sand.u32 %s160, 1
          %s2061 = smul.addr %s2060, 256
          %s2062 = scalar_lea.vmem [#allocation3], %s2061
          %2064 = dma.done %s2059, 4096
        $region56: #{tpu_custom_call.1} parent=51 // pred_fallthru
          _
      $region52: #{tpu_custom_call.1} parent=5 // pred_fallthru
        _
    $region6: #{tpu_custom_call.1} parent=1 // loop_footer
      %s19 = sadd.s32 1, %s15
    $region7: #{tpu_custom_call.1} parent=1 // loop_footer_branch
      %14 = sbr.rel target = $region3
    $region8: #{tpu_custom_call.1} parent=1 // loop_exit
      _
    %2065 = vsyncpa [#allocation4], 1
    %s2066 = scalar_lea.sflag [#allocation4], 1
    %2067 = vsyncpa %s2066, 1

</llo_original>
